<compile_context>
chip_gen: v7x
topology: tpu7x:2x2x1
jax: 0.10.0
libtpu: 0.0.40
codegen_flags: <defaults>
</compile_context>

<pallas_src>
import jax
import jax.numpy as jnp
from jax.experimental import pallas as pl
from jax.experimental.pallas import tpu as pltpu

# ---- small synthetic config --------------------------------------------------
B, S, D = 2, 8, 32          # batch, sequence length, hidden size
H, HD = 4, 8                # heads, head dim (H * HD == D)
M = 64                      # MLP hidden size
L = 2                       # number of encoder layers
VOCAB = 100
EPS = 1e-5
BS = B * S                  # all (batch, seq) rows processed as one block

# ---- packed-slab geometry ----------------------------------------------------
WCOL = 256                                  # lane-dense weight-slab width (2*128)
C_QKV, C_W1, C_W2T = 0, 3 * D, 3 * D + M    # column offsets: 0, 96, 160
assert 3 * D + 2 * M <= WCOL and WCOL % 128 == 0
VROW = 128                                  # f32 vector-slab lane width
# vector-slab row layout (per layer): ln1_g ln1_b ln2_g ln2_b bqkv bo b1 b2
R_LN1G, R_LN1B, R_LN2G, R_LN2B, R_BQKV, R_BO, R_B1, R_B2 = range(8)


def _layernorm(x, g, b):
    mu = jnp.mean(x, axis=-1, keepdims=True)
    var = jnp.mean((x - mu) ** 2, axis=-1, keepdims=True)
    return (x - mu) * jax.lax.rsqrt(var + EPS) * g + b


# ---- fused Pallas kernel -----------------------------------------------------
def encoder_kernel(x_ref, mask_ref, w_ref, wo_ref, v_ref, out_ref):
    """Whole encoder in one invocation: static unroll over L layers; the running
    activation stays in registers/VMEM for the full pass; single output store."""
    x = x_ref[...]                       # (BS, D) f32 embeddings
    mask = mask_ref[...]                 # (BS, BS) additive causal + batch-block
    scale = 1.0 / (HD ** 0.5)

    for li in range(L):                  # static unroll (toy size; see TODO below)
        # ---- packed parameter loads (3 slabs instead of 12+ tiny arrays) ----
        wqkv = w_ref[li, :, C_QKV:C_QKV + 3 * D]        # (D, 3D)   bf16
        w1   = w_ref[li, :, C_W1:C_W1 + M]              # (D, M)    bf16
        w2t  = w_ref[li, :, C_W2T:C_W2T + M]            # (D, M)    bf16 (= w2^T)
        wo_r = wo_ref[li]                               # (H, HD, D) bf16
        vb   = v_ref[li]                                # (8, 128)  f32
        ln1_g, ln1_b = vb[R_LN1G:R_LN1G + 1, :D], vb[R_LN1B:R_LN1B + 1, :D]
        ln2_g, ln2_b = vb[R_LN2G:R_LN2G + 1, :D], vb[R_LN2B:R_LN2B + 1, :D]
        bqkv = vb[R_BQKV:R_BQKV + 1, :3 * D]
        bo   = vb[R_BO:R_BO + 1, :D]
        b1   = vb[R_B1:R_B1 + 1, :M]
        b2   = vb[R_B2:R_B2 + 1, :D]

        # ---- causal multi-head self-attention (pre-LN, CLIP style) ----------
        h = _layernorm(x, ln1_g, ln1_b)
        qkv = jnp.dot(h.astype(jnp.bfloat16), wqkv,
                      preferred_element_type=jnp.float32) + bqkv     # (BS, 3D)

        def heads(off):                  # head-major stack: (H, BS, HD), bf16
            return jnp.stack(
                [qkv[:, off + hh * HD:off + (hh + 1) * HD] for hh in range(H)],
                axis=0).astype(jnp.bfloat16)
        q, k, v = heads(0), heads(D), heads(2 * D)

        # one head-batched MXU contraction each (no per-head dots / .T / concat)
        s = jnp.einsum('hqd,hkd->hqk', q, k,
                       preferred_element_type=jnp.float32) * scale   # (H, BS, BS)
        s = s + mask[None, :, :]
        s = s - jnp.max(s, axis=-1, keepdims=True)
        p = jnp.exp(s)
        p = p / jnp.sum(p, axis=-1, keepdims=True)        # exact f32 softmax
        ctx = jnp.einsum('hqk,hkd->hqd', p.astype(jnp.bfloat16), v,
                         preferred_element_type=jnp.float32)         # (H, BS, HD)

        # head-batched output projection reduced over heads
        # (== concat(ctx_heads) @ wo, with no transpose / lane-concat relayout)
        attn = jnp.einsum('hqd,hdo->hqo', ctx.astype(jnp.bfloat16), wo_r,
                          preferred_element_type=jnp.float32)        # (H, BS, D)
        x = x + jnp.sum(attn, axis=0) + bo

        # ---- MLP block (quick-GELU, as in CLIP) ------------------------------
        h2 = _layernorm(x, ln2_g, ln2_b)
        f = jnp.dot(h2.astype(jnp.bfloat16), w1,
                    preferred_element_type=jnp.float32) + b1         # (BS, M)
        f = f * jax.nn.sigmoid(1.702 * f)
        f = jnp.einsum('nm,dm->nd', f.astype(jnp.bfloat16), w2t,
                       preferred_element_type=jnp.float32) + b2      # (BS, D)
        x = x + f

    # ---- final LayerNorm, single output store --------------------------------
    # TODO(synk): at real sizes present a 128-lane-dense output slab instead of
    # this (BS, 32) masked store.
    vf = v_ref[L]
    out_ref[...] = _layernorm(x, vf[0:1, :D], vf[1:2, :D])


# ---- wrapper -----------------------------------------------------------------
def _build_mask():
    # Causal within each batch element; block-diagonal across the collapsed
    # (B*S) row axis so rows never attend across batch elements.
    idx = jnp.arange(BS)
    bid, pos = idx // S, idx % S
    ok = (bid[:, None] == bid[None, :]) & (pos[:, None] >= pos[None, :])
    return jnp.where(ok, 0.0, -1e9).astype(jnp.float32)


_VMEM = pl.BlockSpec(memory_space=pltpu.MemorySpace.VMEM)


def _encoder(x2d, mask, w_slab, wo_slab, v_slab):
    return pl.pallas_call(
        encoder_kernel,
        out_shape=jax.ShapeDtypeStruct((BS, D), jnp.float32),
        in_specs=[_VMEM] * 5,
        out_specs=_VMEM,
        # TODO(synk): for real CLIP sizes (D=768, M=3072, L=12+) reintroduce a
        # layer grid ("arbitrary") with the activation resident in VMEM scratch,
        # set vmem_limit_bytes with v7x's 64 MiB VMEM in mind, and add a leading
        # "parallel" batch axis so the second TensorCore on v7x gets work.
    )(x2d, mask, w_slab, wo_slab, v_slab)


@jax.jit
def neuron_text_encoder_forward(token_ids, params):
    # TODO(synk): token-embedding gather is glue, done in plain JAX.
    x = params['tok_emb'][token_ids] + params['pos_emb'][None, :S, :]
    x2d = x.astype(jnp.float32).reshape(BS, D)
    out = _encoder(x2d, params['mask'], params['w_slab'],
                   params['wo_slab'], params['v_slab'])
    return [out.reshape(B, S, D)]


# ---- deterministic parameter init / packing -----------------------------------
def init_params(key):
    def nrm(k, shape, scale=0.02):
        return (scale * jax.random.normal(k, shape)).astype(jnp.float32)

    def vrow(vec):
        return jnp.zeros((VROW,), jnp.float32).at[:vec.shape[0]].set(vec)

    keys = jax.random.split(key, 2 + L)
    tok_emb = nrm(keys[0], (VOCAB, D))
    pos_emb = nrm(keys[1], (S, D))

    w_blocks, wo_blocks, v_blocks = [], [], []
    for li in range(L):
        lk = jax.random.split(keys[2 + li], 6)
        wqkv = jnp.concatenate([nrm(lk[0], (D, D)), nrm(lk[1], (D, D)),
                                nrm(lk[2], (D, D))], axis=1)          # (D, 3D)
        wo = nrm(lk[3], (D, D))
        w1 = nrm(lk[4], (D, M))
        w2 = nrm(lk[5], (M, D))

        blk = jnp.zeros((D, WCOL), jnp.float32)                       # lane-dense
        blk = blk.at[:, C_QKV:C_QKV + 3 * D].set(wqkv)
        blk = blk.at[:, C_W1:C_W1 + M].set(w1)
        blk = blk.at[:, C_W2T:C_W2T + M].set(w2.T)
        w_blocks.append(blk)
        wo_blocks.append(wo.reshape(H, HD, D))                        # head-major

        v_blocks.append(jnp.stack([
            vrow(jnp.ones((D,), jnp.float32)),        # ln1_g
            vrow(jnp.zeros((D,), jnp.float32)),       # ln1_b
            vrow(jnp.ones((D,), jnp.float32)),        # ln2_g
            vrow(jnp.zeros((D,), jnp.float32)),       # ln2_b
            vrow(jnp.zeros((3 * D,), jnp.float32)),   # bqkv
            vrow(jnp.zeros((D,), jnp.float32)),       # bo
            vrow(jnp.zeros((M,), jnp.float32)),       # b1
            vrow(jnp.zeros((D,), jnp.float32)),       # b2
        ]))

    # final LayerNorm lives in rows 0/1 of the trailing vector block
    v_blocks.append(jnp.stack(
        [vrow(jnp.ones((D,), jnp.float32)), vrow(jnp.zeros((D,), jnp.float32))]
        + [jnp.zeros((VROW,), jnp.float32)] * 6))

    return {
        'tok_emb': tok_emb,
        'pos_emb': pos_emb,
        'mask': _build_mask(),
        # bf16 matmul weights (half the HBM->VMEM bytes, native MXU dtype);
        # accumulation stays f32 via preferred_element_type.
        'w_slab': jnp.stack(w_blocks).astype(jnp.bfloat16),    # (L, D, 256)
        'wo_slab': jnp.stack(wo_blocks).astype(jnp.bfloat16),  # (L, H, HD, D)
        'v_slab': jnp.stack(v_blocks),                         # (L+1, 8, 128) f32
    }


if __name__ == "__main__":
    key = jax.random.PRNGKey(0)
    pkey, ikey = jax.random.split(key)
    params = init_params(pkey)

    # `emb` in the reference forward are token ids fed to the text encoder.
    emb = jax.random.randint(ikey, (B, S), 0, VOCAB, dtype=jnp.int32)

    out = neuron_text_encoder_forward(emb, params)
    last_hidden_state = out[0]
    jax.block_until_ready(last_hidden_state)
    assert last_hidden_state.shape == (B, S, D)
    assert last_hidden_state.dtype == jnp.float32
    print("KERNEL_OK")
</pallas_src>

<mosaic_0001>
module attributes {stable_mosaic.version = 11 : i64} {
  func.func @encoder_kernel(%arg0: memref<16x32xf32, #tpu.memory_space<vmem>>, %arg1: memref<16x16xf32, #tpu.memory_space<vmem>>, %arg2: memref<2x32x256xbf16, #tpu.memory_space<vmem>>, %arg3: memref<2x4x8x32xbf16, #tpu.memory_space<vmem>>, %arg4: memref<3x8x128xf32, #tpu.memory_space<vmem>>, %arg5: memref<16x32xf32, #tpu.memory_space<vmem>>) attributes {dimension_semantics = [], scalar_prefetch = 0 : i64, scratch_operands = 0 : i64, tpu.core_type = #tpu.core_type<tc>} {
    %c0 = arith.constant 0 : index
    %c0_0 = arith.constant 0 : index
    %0 = vector.load %arg0[%c0, %c0_0] : memref<16x32xf32, #tpu.memory_space<vmem>>, vector<16x32xf32>
    %c0_1 = arith.constant 0 : index
    %c0_2 = arith.constant 0 : index
    %1 = vector.load %arg1[%c0_1, %c0_2] : memref<16x16xf32, #tpu.memory_space<vmem>>, vector<16x16xf32>
    %c0_3 = arith.constant 0 : index
    %c0_4 = arith.constant 0 : index
    %c0_5 = arith.constant 0 : index
    %2 = vector.load %arg2[%c0_3, %c0_4, %c0_5] : memref<2x32x256xbf16, #tpu.memory_space<vmem>>, vector<1x32x96xbf16>
    %3 = vector.shape_cast %2 : vector<1x32x96xbf16> to vector<32x96xbf16>
    %c0_6 = arith.constant 0 : index
    %c0_7 = arith.constant 0 : index
    %c96 = arith.constant 96 : index
    %4 = vector.load %arg2[%c0_6, %c0_7, %c96] : memref<2x32x256xbf16, #tpu.memory_space<vmem>>, vector<1x32x64xbf16>
    %5 = vector.shape_cast %4 : vector<1x32x64xbf16> to vector<32x64xbf16>
    %c0_8 = arith.constant 0 : index
    %c0_9 = arith.constant 0 : index
    %c160 = arith.constant 160 : index
    %6 = vector.load %arg2[%c0_8, %c0_9, %c160] : memref<2x32x256xbf16, #tpu.memory_space<vmem>>, vector<1x32x64xbf16>
    %7 = vector.shape_cast %6 : vector<1x32x64xbf16> to vector<32x64xbf16>
    %c0_10 = arith.constant 0 : index
    %c0_11 = arith.constant 0 : index
    %c0_12 = arith.constant 0 : index
    %c0_13 = arith.constant 0 : index
    %8 = vector.load %arg3[%c0_10, %c0_11, %c0_12, %c0_13] : memref<2x4x8x32xbf16, #tpu.memory_space<vmem>>, vector<1x4x8x32xbf16>
    %9 = vector.shape_cast %8 : vector<1x4x8x32xbf16> to vector<4x8x32xbf16>
    %c0_14 = arith.constant 0 : index
    %c0_15 = arith.constant 0 : index
    %c0_16 = arith.constant 0 : index
    %10 = vector.load %arg4[%c0_14, %c0_15, %c0_16] : memref<3x8x128xf32, #tpu.memory_space<vmem>>, vector<1x8x128xf32>
    %11 = vector.shape_cast %10 : vector<1x8x128xf32> to vector<8x128xf32>
    %12 = vector.extract_strided_slice %11 {offsets = [0, 0], sizes = [1, 32], strides = [1, 1]} : vector<8x128xf32> to vector<1x32xf32>
    %13 = vector.extract_strided_slice %11 {offsets = [1, 0], sizes = [1, 32], strides = [1, 1]} : vector<8x128xf32> to vector<1x32xf32>
    %14 = vector.extract_strided_slice %11 {offsets = [2, 0], sizes = [1, 32], strides = [1, 1]} : vector<8x128xf32> to vector<1x32xf32>
    %15 = vector.extract_strided_slice %11 {offsets = [3, 0], sizes = [1, 32], strides = [1, 1]} : vector<8x128xf32> to vector<1x32xf32>
    %16 = vector.extract_strided_slice %11 {offsets = [4, 0], sizes = [1, 96], strides = [1, 1]} : vector<8x128xf32> to vector<1x96xf32>
    %17 = vector.extract_strided_slice %11 {offsets = [5, 0], sizes = [1, 32], strides = [1, 1]} : vector<8x128xf32> to vector<1x32xf32>
    %18 = vector.extract_strided_slice %11 {offsets = [6, 0], sizes = [1, 64], strides = [1, 1]} : vector<8x128xf32> to vector<1x64xf32>
    %19 = vector.extract_strided_slice %11 {offsets = [7, 0], sizes = [1, 32], strides = [1, 1]} : vector<8x128xf32> to vector<1x32xf32>
    %cst = arith.constant dense<0.000000e+00> : vector<16xf32>
    %20 = vector.multi_reduction <add>, %0, %cst [1] : vector<16x32xf32> to vector<16xf32>
    %21 = vector.shape_cast %20 : vector<16xf32> to vector<16x1xf32>
    %cst_17 = arith.constant 3.200000e+01 : f32
    %22 = vector.broadcast %cst_17 : f32 to vector<16x1xf32>
    %23 = arith.divf %21, %22 : vector<16x1xf32>
    %24 = vector.broadcast %23 : vector<16x1xf32> to vector<16x32xf32>
    %25 = arith.subf %0, %24 : vector<16x32xf32>
    %26 = arith.mulf %25, %25 : vector<16x32xf32>
    %cst_18 = arith.constant dense<0.000000e+00> : vector<16xf32>
    %27 = vector.multi_reduction <add>, %26, %cst_18 [1] : vector<16x32xf32> to vector<16xf32>
    %28 = vector.shape_cast %27 : vector<16xf32> to vector<16x1xf32>
    %cst_19 = arith.constant 3.200000e+01 : f32
    %29 = vector.broadcast %cst_19 : f32 to vector<16x1xf32>
    %30 = arith.divf %28, %29 : vector<16x1xf32>
    %31 = vector.broadcast %23 : vector<16x1xf32> to vector<16x32xf32>
    %32 = arith.subf %0, %31 : vector<16x32xf32>
    %cst_20 = arith.constant 9.99999974E-6 : f32
    %33 = vector.broadcast %cst_20 : f32 to vector<16x1xf32>
    %34 = arith.addf %30, %33 : vector<16x1xf32>
    %35 = math.rsqrt %34 : vector<16x1xf32>
    %36 = vector.broadcast %35 : vector<16x1xf32> to vector<16x32xf32>
    %37 = arith.mulf %32, %36 : vector<16x32xf32>
    %38 = vector.broadcast %12 : vector<1x32xf32> to vector<16x32xf32>
    %39 = arith.mulf %37, %38 : vector<16x32xf32>
    %40 = vector.broadcast %13 : vector<1x32xf32> to vector<16x32xf32>
    %41 = arith.addf %39, %40 : vector<16x32xf32>
    %42 = arith.truncf %41 : vector<16x32xf32> to vector<16x32xbf16>
    %cst_21 = arith.constant dense<0.000000e+00> : vector<16x96xf32>
    %43 = tpu.matmul %42, %3, %cst_21 {dimension_numbers = #tpu.dot_dimension_numbers<[1], [0], [0], [1], [0, 0, 1, 1], [], []>} : vector<16x32xbf16>, vector<32x96xbf16>, vector<16x96xf32> -> vector<16x96xf32>
    %44 = vector.broadcast %16 : vector<1x96xf32> to vector<16x96xf32>
    %45 = arith.addf %43, %44 : vector<16x96xf32>
    %46 = vector.extract_strided_slice %45 {offsets = [0, 0], sizes = [16, 8], strides = [1, 1]} : vector<16x96xf32> to vector<16x8xf32>
    %47 = vector.extract_strided_slice %45 {offsets = [0, 8], sizes = [16, 8], strides = [1, 1]} : vector<16x96xf32> to vector<16x8xf32>
    %48 = vector.extract_strided_slice %45 {offsets = [0, 16], sizes = [16, 8], strides = [1, 1]} : vector<16x96xf32> to vector<16x8xf32>
    %49 = vector.extract_strided_slice %45 {offsets = [0, 24], sizes = [16, 8], strides = [1, 1]} : vector<16x96xf32> to vector<16x8xf32>
    %50 = vector.shape_cast %46 : vector<16x8xf32> to vector<1x16x8xf32>
    %51 = vector.shape_cast %47 : vector<16x8xf32> to vector<1x16x8xf32>
    %52 = vector.shape_cast %48 : vector<16x8xf32> to vector<1x16x8xf32>
    %53 = vector.shape_cast %49 : vector<16x8xf32> to vector<1x16x8xf32>
    %54 = tpu.concatenate %50, %51, %52, %53 in 0 : vector<1x16x8xf32>, vector<1x16x8xf32>, vector<1x16x8xf32>, vector<1x16x8xf32> -> vector<4x16x8xf32>
    %55 = arith.truncf %54 : vector<4x16x8xf32> to vector<4x16x8xbf16>
    %56 = vector.extract_strided_slice %45 {offsets = [0, 32], sizes = [16, 8], strides = [1, 1]} : vector<16x96xf32> to vector<16x8xf32>
    %57 = vector.extract_strided_slice %45 {offsets = [0, 40], sizes = [16, 8], strides = [1, 1]} : vector<16x96xf32> to vector<16x8xf32>
    %58 = vector.extract_strided_slice %45 {offsets = [0, 48], sizes = [16, 8], strides = [1, 1]} : vector<16x96xf32> to vector<16x8xf32>
    %59 = vector.extract_strided_slice %45 {offsets = [0, 56], sizes = [16, 8], strides = [1, 1]} : vector<16x96xf32> to vector<16x8xf32>
    %60 = vector.shape_cast %56 : vector<16x8xf32> to vector<1x16x8xf32>
    %61 = vector.shape_cast %57 : vector<16x8xf32> to vector<1x16x8xf32>
    %62 = vector.shape_cast %58 : vector<16x8xf32> to vector<1x16x8xf32>
    %63 = vector.shape_cast %59 : vector<16x8xf32> to vector<1x16x8xf32>
    %64 = tpu.concatenate %60, %61, %62, %63 in 0 : vector<1x16x8xf32>, vector<1x16x8xf32>, vector<1x16x8xf32>, vector<1x16x8xf32> -> vector<4x16x8xf32>
    %65 = arith.truncf %64 : vector<4x16x8xf32> to vector<4x16x8xbf16>
    %66 = vector.extract_strided_slice %45 {offsets = [0, 64], sizes = [16, 8], strides = [1, 1]} : vector<16x96xf32> to vector<16x8xf32>
    %67 = vector.extract_strided_slice %45 {offsets = [0, 72], sizes = [16, 8], strides = [1, 1]} : vector<16x96xf32> to vector<16x8xf32>
    %68 = vector.extract_strided_slice %45 {offsets = [0, 80], sizes = [16, 8], strides = [1, 1]} : vector<16x96xf32> to vector<16x8xf32>
    %69 = vector.extract_strided_slice %45 {offsets = [0, 88], sizes = [16, 8], strides = [1, 1]} : vector<16x96xf32> to vector<16x8xf32>
    %70 = vector.shape_cast %66 : vector<16x8xf32> to vector<1x16x8xf32>
    %71 = vector.shape_cast %67 : vector<16x8xf32> to vector<1x16x8xf32>
    %72 = vector.shape_cast %68 : vector<16x8xf32> to vector<1x16x8xf32>
    %73 = vector.shape_cast %69 : vector<16x8xf32> to vector<1x16x8xf32>
    %74 = tpu.concatenate %70, %71, %72, %73 in 0 : vector<1x16x8xf32>, vector<1x16x8xf32>, vector<1x16x8xf32>, vector<1x16x8xf32> -> vector<4x16x8xf32>
    %75 = arith.truncf %74 : vector<4x16x8xf32> to vector<4x16x8xbf16>
    "tpu.trace_start"() <{level = 10 : i32, message = "hqd,hkd->hqk"}> : () -> ()
    %cst_22 = arith.constant dense<0.000000e+00> : vector<4x16x16xf32>
    %76 = tpu.matmul %55, %65, %cst_22 {dimension_numbers = #tpu.dot_dimension_numbers<[2], [2], [1], [1], [0, 0, 0, 1, 1, 1], [0], [0]>} : vector<4x16x8xbf16>, vector<4x16x8xbf16>, vector<4x16x16xf32> -> vector<4x16x16xf32>
    "tpu.trace_stop"() : () -> ()
    %cst_23 = arith.constant 0.353553385 : f32
    %77 = vector.broadcast %cst_23 : f32 to vector<4x16x16xf32>
    %78 = arith.mulf %76, %77 : vector<4x16x16xf32>
    %79 = vector.shape_cast %1 : vector<16x16xf32> to vector<1x16x16xf32>
    %80 = vector.broadcast %79 : vector<1x16x16xf32> to vector<4x16x16xf32>
    %81 = arith.addf %78, %80 : vector<4x16x16xf32>
    %cst_24 = arith.constant dense<0xFF800000> : vector<4x16xf32>
    %82 = vector.multi_reduction <maximumf>, %81, %cst_24 [2] : vector<4x16x16xf32> to vector<4x16xf32>
    %83 = vector.shape_cast %82 : vector<4x16xf32> to vector<4x16x1xf32>
    %84 = vector.broadcast %83 : vector<4x16x1xf32> to vector<4x16x16xf32>
    %85 = arith.subf %81, %84 : vector<4x16x16xf32>
    %86 = math.exp %85 : vector<4x16x16xf32>
    %cst_25 = arith.constant dense<0.000000e+00> : vector<4x16xf32>
    %87 = vector.multi_reduction <add>, %86, %cst_25 [2] : vector<4x16x16xf32> to vector<4x16xf32>
    %88 = vector.shape_cast %87 : vector<4x16xf32> to vector<4x16x1xf32>
    %89 = vector.broadcast %88 : vector<4x16x1xf32> to vector<4x16x16xf32>
    %90 = arith.divf %86, %89 : vector<4x16x16xf32>
    %91 = arith.truncf %90 : vector<4x16x16xf32> to vector<4x16x16xbf16>
    "tpu.trace_start"() <{level = 10 : i32, message = "hqk,hkd->hqd"}> : () -> ()
    %cst_26 = arith.constant dense<0.000000e+00> : vector<4x16x8xf32>
    %92 = tpu.matmul %91, %75, %cst_26 {dimension_numbers = #tpu.dot_dimension_numbers<[2], [1], [1], [2], [0, 0, 0, 1, 1, 2], [0], [0]>} : vector<4x16x16xbf16>, vector<4x16x8xbf16>, vector<4x16x8xf32> -> vector<4x16x8xf32>
    "tpu.trace_stop"() : () -> ()
    %93 = arith.truncf %92 : vector<4x16x8xf32> to vector<4x16x8xbf16>
    "tpu.trace_start"() <{level = 10 : i32, message = "hqd,hdo->hqo"}> : () -> ()
    %cst_27 = arith.constant dense<0.000000e+00> : vector<4x16x32xf32>
    %94 = tpu.matmul %93, %9, %cst_27 {dimension_numbers = #tpu.dot_dimension_numbers<[2], [1], [1], [2], [0, 0, 0, 1, 1, 2], [0], [0]>} : vector<4x16x8xbf16>, vector<4x8x32xbf16>, vector<4x16x32xf32> -> vector<4x16x32xf32>
    "tpu.trace_stop"() : () -> ()
    %cst_28 = arith.constant dense<0.000000e+00> : vector<16x32xf32>
    %95 = vector.multi_reduction <add>, %94, %cst_28 [0] : vector<4x16x32xf32> to vector<16x32xf32>
    %96 = arith.addf %0, %95 : vector<16x32xf32>
    %97 = vector.broadcast %17 : vector<1x32xf32> to vector<16x32xf32>
    %98 = arith.addf %96, %97 : vector<16x32xf32>
    %cst_29 = arith.constant dense<0.000000e+00> : vector<16xf32>
    %99 = vector.multi_reduction <add>, %98, %cst_29 [1] : vector<16x32xf32> to vector<16xf32>
    %100 = vector.shape_cast %99 : vector<16xf32> to vector<16x1xf32>
    %cst_30 = arith.constant 3.200000e+01 : f32
    %101 = vector.broadcast %cst_30 : f32 to vector<16x1xf32>
    %102 = arith.divf %100, %101 : vector<16x1xf32>
    %103 = vector.broadcast %102 : vector<16x1xf32> to vector<16x32xf32>
    %104 = arith.subf %98, %103 : vector<16x32xf32>
    %105 = arith.mulf %104, %104 : vector<16x32xf32>
    %cst_31 = arith.constant dense<0.000000e+00> : vector<16xf32>
    %106 = vector.multi_reduction <add>, %105, %cst_31 [1] : vector<16x32xf32> to vector<16xf32>
    %107 = vector.shape_cast %106 : vector<16xf32> to vector<16x1xf32>
    %cst_32 = arith.constant 3.200000e+01 : f32
    %108 = vector.broadcast %cst_32 : f32 to vector<16x1xf32>
    %109 = arith.divf %107, %108 : vector<16x1xf32>
    %110 = vector.broadcast %102 : vector<16x1xf32> to vector<16x32xf32>
    %111 = arith.subf %98, %110 : vector<16x32xf32>
    %cst_33 = arith.constant 9.99999974E-6 : f32
    %112 = vector.broadcast %cst_33 : f32 to vector<16x1xf32>
    %113 = arith.addf %109, %112 : vector<16x1xf32>
    %114 = math.rsqrt %113 : vector<16x1xf32>
    %115 = vector.broadcast %114 : vector<16x1xf32> to vector<16x32xf32>
    %116 = arith.mulf %111, %115 : vector<16x32xf32>
    %117 = vector.broadcast %14 : vector<1x32xf32> to vector<16x32xf32>
    %118 = arith.mulf %116, %117 : vector<16x32xf32>
    %119 = vector.broadcast %15 : vector<1x32xf32> to vector<16x32xf32>
    %120 = arith.addf %118, %119 : vector<16x32xf32>
    %121 = arith.truncf %120 : vector<16x32xf32> to vector<16x32xbf16>
    %cst_34 = arith.constant dense<0.000000e+00> : vector<16x64xf32>
    %122 = tpu.matmul %121, %5, %cst_34 {dimension_numbers = #tpu.dot_dimension_numbers<[1], [0], [0], [1], [0, 0, 1, 1], [], []>} : vector<16x32xbf16>, vector<32x64xbf16>, vector<16x64xf32> -> vector<16x64xf32>
    %123 = vector.broadcast %18 : vector<1x64xf32> to vector<16x64xf32>
    %124 = arith.addf %122, %123 : vector<16x64xf32>
    %cst_35 = arith.constant 1.702000e+00 : f32
    %125 = vector.broadcast %cst_35 : f32 to vector<16x64xf32>
    %126 = arith.mulf %125, %124 : vector<16x64xf32>
    %127 = arith.negf %126 : vector<16x64xf32>
    %128 = math.exp %127 : vector<16x64xf32>
    %cst_36 = arith.constant 1.000000e+00 : f32
    %129 = vector.broadcast %cst_36 : f32 to vector<16x64xf32>
    %130 = arith.addf %129, %128 : vector<16x64xf32>
    %131 = arith.divf %129, %130 : vector<16x64xf32>
    %132 = arith.mulf %124, %131 : vector<16x64xf32>
    %133 = arith.truncf %132 : vector<16x64xf32> to vector<16x64xbf16>
    "tpu.trace_start"() <{level = 10 : i32, message = "nm,dm->nd"}> : () -> ()
    %cst_37 = arith.constant dense<0.000000e+00> : vector<16x32xf32>
    %134 = tpu.matmul %133, %7, %cst_37 {dimension_numbers = #tpu.dot_dimension_numbers<[1], [1], [0], [0], [0, 0, 1, 0], [], []>} : vector<16x64xbf16>, vector<32x64xbf16>, vector<16x32xf32> -> vector<16x32xf32>
    "tpu.trace_stop"() : () -> ()
    %135 = vector.broadcast %19 : vector<1x32xf32> to vector<16x32xf32>
    %136 = arith.addf %134, %135 : vector<16x32xf32>
    %137 = arith.addf %98, %136 : vector<16x32xf32>
    %c1 = arith.constant 1 : index
    %c0_38 = arith.constant 0 : index
    %c0_39 = arith.constant 0 : index
    %138 = vector.load %arg2[%c1, %c0_38, %c0_39] : memref<2x32x256xbf16, #tpu.memory_space<vmem>>, vector<1x32x96xbf16>
    %139 = vector.shape_cast %138 : vector<1x32x96xbf16> to vector<32x96xbf16>
    %c1_40 = arith.constant 1 : index
    %c0_41 = arith.constant 0 : index
    %c96_42 = arith.constant 96 : index
    %140 = vector.load %arg2[%c1_40, %c0_41, %c96_42] : memref<2x32x256xbf16, #tpu.memory_space<vmem>>, vector<1x32x64xbf16>
    %141 = vector.shape_cast %140 : vector<1x32x64xbf16> to vector<32x64xbf16>
    %c1_43 = arith.constant 1 : index
    %c0_44 = arith.constant 0 : index
    %c160_45 = arith.constant 160 : index
    %142 = vector.load %arg2[%c1_43, %c0_44, %c160_45] : memref<2x32x256xbf16, #tpu.memory_space<vmem>>, vector<1x32x64xbf16>
    %143 = vector.shape_cast %142 : vector<1x32x64xbf16> to vector<32x64xbf16>
    %c1_46 = arith.constant 1 : index
    %c0_47 = arith.constant 0 : index
    %c0_48 = arith.constant 0 : index
    %c0_49 = arith.constant 0 : index
    %144 = vector.load %arg3[%c1_46, %c0_47, %c0_48, %c0_49] : memref<2x4x8x32xbf16, #tpu.memory_space<vmem>>, vector<1x4x8x32xbf16>
    %145 = vector.shape_cast %144 : vector<1x4x8x32xbf16> to vector<4x8x32xbf16>
    %c1_50 = arith.constant 1 : index
    %c0_51 = arith.constant 0 : index
    %c0_52 = arith.constant 0 : index
    %146 = vector.load %arg4[%c1_50, %c0_51, %c0_52] : memref<3x8x128xf32, #tpu.memory_space<vmem>>, vector<1x8x128xf32>
    %147 = vector.shape_cast %146 : vector<1x8x128xf32> to vector<8x128xf32>
    %148 = vector.extract_strided_slice %147 {offsets = [0, 0], sizes = [1, 32], strides = [1, 1]} : vector<8x128xf32> to vector<1x32xf32>
    %149 = vector.extract_strided_slice %147 {offsets = [1, 0], sizes = [1, 32], strides = [1, 1]} : vector<8x128xf32> to vector<1x32xf32>
    %150 = vector.extract_strided_slice %147 {offsets = [2, 0], sizes = [1, 32], strides = [1, 1]} : vector<8x128xf32> to vector<1x32xf32>
    %151 = vector.extract_strided_slice %147 {offsets = [3, 0], sizes = [1, 32], strides = [1, 1]} : vector<8x128xf32> to vector<1x32xf32>
    %152 = vector.extract_strided_slice %147 {offsets = [4, 0], sizes = [1, 96], strides = [1, 1]} : vector<8x128xf32> to vector<1x96xf32>
    %153 = vector.extract_strided_slice %147 {offsets = [5, 0], sizes = [1, 32], strides = [1, 1]} : vector<8x128xf32> to vector<1x32xf32>
    %154 = vector.extract_strided_slice %147 {offsets = [6, 0], sizes = [1, 64], strides = [1, 1]} : vector<8x128xf32> to vector<1x64xf32>
    %155 = vector.extract_strided_slice %147 {offsets = [7, 0], sizes = [1, 32], strides = [1, 1]} : vector<8x128xf32> to vector<1x32xf32>
    %cst_53 = arith.constant dense<0.000000e+00> : vector<16xf32>
    %156 = vector.multi_reduction <add>, %137, %cst_53 [1] : vector<16x32xf32> to vector<16xf32>
    %157 = vector.shape_cast %156 : vector<16xf32> to vector<16x1xf32>
    %cst_54 = arith.constant 3.200000e+01 : f32
    %158 = vector.broadcast %cst_54 : f32 to vector<16x1xf32>
    %159 = arith.divf %157, %158 : vector<16x1xf32>
    %160 = vector.broadcast %159 : vector<16x1xf32> to vector<16x32xf32>
    %161 = arith.subf %137, %160 : vector<16x32xf32>
    %162 = arith.mulf %161, %161 : vector<16x32xf32>
    %cst_55 = arith.constant dense<0.000000e+00> : vector<16xf32>
    %163 = vector.multi_reduction <add>, %162, %cst_55 [1] : vector<16x32xf32> to vector<16xf32>
    %164 = vector.shape_cast %163 : vector<16xf32> to vector<16x1xf32>
    %cst_56 = arith.constant 3.200000e+01 : f32
    %165 = vector.broadcast %cst_56 : f32 to vector<16x1xf32>
    %166 = arith.divf %164, %165 : vector<16x1xf32>
    %167 = vector.broadcast %159 : vector<16x1xf32> to vector<16x32xf32>
    %168 = arith.subf %137, %167 : vector<16x32xf32>
    %cst_57 = arith.constant 9.99999974E-6 : f32
    %169 = vector.broadcast %cst_57 : f32 to vector<16x1xf32>
    %170 = arith.addf %166, %169 : vector<16x1xf32>
    %171 = math.rsqrt %170 : vector<16x1xf32>
    %172 = vector.broadcast %171 : vector<16x1xf32> to vector<16x32xf32>
    %173 = arith.mulf %168, %172 : vector<16x32xf32>
    %174 = vector.broadcast %148 : vector<1x32xf32> to vector<16x32xf32>
    %175 = arith.mulf %173, %174 : vector<16x32xf32>
    %176 = vector.broadcast %149 : vector<1x32xf32> to vector<16x32xf32>
    %177 = arith.addf %175, %176 : vector<16x32xf32>
    %178 = arith.truncf %177 : vector<16x32xf32> to vector<16x32xbf16>
    %cst_58 = arith.constant dense<0.000000e+00> : vector<16x96xf32>
    %179 = tpu.matmul %178, %139, %cst_58 {dimension_numbers = #tpu.dot_dimension_numbers<[1], [0], [0], [1], [0, 0, 1, 1], [], []>} : vector<16x32xbf16>, vector<32x96xbf16>, vector<16x96xf32> -> vector<16x96xf32>
    %180 = vector.broadcast %152 : vector<1x96xf32> to vector<16x96xf32>
    %181 = arith.addf %179, %180 : vector<16x96xf32>
    %182 = vector.extract_strided_slice %181 {offsets = [0, 0], sizes = [16, 8], strides = [1, 1]} : vector<16x96xf32> to vector<16x8xf32>
    %183 = vector.extract_strided_slice %181 {offsets = [0, 8], sizes = [16, 8], strides = [1, 1]} : vector<16x96xf32> to vector<16x8xf32>
    %184 = vector.extract_strided_slice %181 {offsets = [0, 16], sizes = [16, 8], strides = [1, 1]} : vector<16x96xf32> to vector<16x8xf32>
    %185 = vector.extract_strided_slice %181 {offsets = [0, 24], sizes = [16, 8], strides = [1, 1]} : vector<16x96xf32> to vector<16x8xf32>
    %186 = vector.shape_cast %182 : vector<16x8xf32> to vector<1x16x8xf32>
    %187 = vector.shape_cast %183 : vector<16x8xf32> to vector<1x16x8xf32>
    %188 = vector.shape_cast %184 : vector<16x8xf32> to vector<1x16x8xf32>
    %189 = vector.shape_cast %185 : vector<16x8xf32> to vector<1x16x8xf32>
    %190 = tpu.concatenate %186, %187, %188, %189 in 0 : vector<1x16x8xf32>, vector<1x16x8xf32>, vector<1x16x8xf32>, vector<1x16x8xf32> -> vector<4x16x8xf32>
    %191 = arith.truncf %190 : vector<4x16x8xf32> to vector<4x16x8xbf16>
    %192 = vector.extract_strided_slice %181 {offsets = [0, 32], sizes = [16, 8], strides = [1, 1]} : vector<16x96xf32> to vector<16x8xf32>
    %193 = vector.extract_strided_slice %181 {offsets = [0, 40], sizes = [16, 8], strides = [1, 1]} : vector<16x96xf32> to vector<16x8xf32>
    %194 = vector.extract_strided_slice %181 {offsets = [0, 48], sizes = [16, 8], strides = [1, 1]} : vector<16x96xf32> to vector<16x8xf32>
    %195 = vector.extract_strided_slice %181 {offsets = [0, 56], sizes = [16, 8], strides = [1, 1]} : vector<16x96xf32> to vector<16x8xf32>
    %196 = vector.shape_cast %192 : vector<16x8xf32> to vector<1x16x8xf32>
    %197 = vector.shape_cast %193 : vector<16x8xf32> to vector<1x16x8xf32>
    %198 = vector.shape_cast %194 : vector<16x8xf32> to vector<1x16x8xf32>
    %199 = vector.shape_cast %195 : vector<16x8xf32> to vector<1x16x8xf32>
    %200 = tpu.concatenate %196, %197, %198, %199 in 0 : vector<1x16x8xf32>, vector<1x16x8xf32>, vector<1x16x8xf32>, vector<1x16x8xf32> -> vector<4x16x8xf32>
    %201 = arith.truncf %200 : vector<4x16x8xf32> to vector<4x16x8xbf16>
    %202 = vector.extract_strided_slice %181 {offsets = [0, 64], sizes = [16, 8], strides = [1, 1]} : vector<16x96xf32> to vector<16x8xf32>
    %203 = vector.extract_strided_slice %181 {offsets = [0, 72], sizes = [16, 8], strides = [1, 1]} : vector<16x96xf32> to vector<16x8xf32>
    %204 = vector.extract_strided_slice %181 {offsets = [0, 80], sizes = [16, 8], strides = [1, 1]} : vector<16x96xf32> to vector<16x8xf32>
    %205 = vector.extract_strided_slice %181 {offsets = [0, 88], sizes = [16, 8], strides = [1, 1]} : vector<16x96xf32> to vector<16x8xf32>
    %206 = vector.shape_cast %202 : vector<16x8xf32> to vector<1x16x8xf32>
    %207 = vector.shape_cast %203 : vector<16x8xf32> to vector<1x16x8xf32>
    %208 = vector.shape_cast %204 : vector<16x8xf32> to vector<1x16x8xf32>
    %209 = vector.shape_cast %205 : vector<16x8xf32> to vector<1x16x8xf32>
    %210 = tpu.concatenate %206, %207, %208, %209 in 0 : vector<1x16x8xf32>, vector<1x16x8xf32>, vector<1x16x8xf32>, vector<1x16x8xf32> -> vector<4x16x8xf32>
    %211 = arith.truncf %210 : vector<4x16x8xf32> to vector<4x16x8xbf16>
    "tpu.trace_start"() <{level = 10 : i32, message = "hqd,hkd->hqk"}> : () -> ()
    %cst_59 = arith.constant dense<0.000000e+00> : vector<4x16x16xf32>
    %212 = tpu.matmul %191, %201, %cst_59 {dimension_numbers = #tpu.dot_dimension_numbers<[2], [2], [1], [1], [0, 0, 0, 1, 1, 1], [0], [0]>} : vector<4x16x8xbf16>, vector<4x16x8xbf16>, vector<4x16x16xf32> -> vector<4x16x16xf32>
    "tpu.trace_stop"() : () -> ()
    %cst_60 = arith.constant 0.353553385 : f32
    %213 = vector.broadcast %cst_60 : f32 to vector<4x16x16xf32>
    %214 = arith.mulf %212, %213 : vector<4x16x16xf32>
    %215 = vector.shape_cast %1 : vector<16x16xf32> to vector<1x16x16xf32>
    %216 = vector.broadcast %215 : vector<1x16x16xf32> to vector<4x16x16xf32>
    %217 = arith.addf %214, %216 : vector<4x16x16xf32>
    %cst_61 = arith.constant dense<0xFF800000> : vector<4x16xf32>
    %218 = vector.multi_reduction <maximumf>, %217, %cst_61 [2] : vector<4x16x16xf32> to vector<4x16xf32>
    %219 = vector.shape_cast %218 : vector<4x16xf32> to vector<4x16x1xf32>
    %220 = vector.broadcast %219 : vector<4x16x1xf32> to vector<4x16x16xf32>
    %221 = arith.subf %217, %220 : vector<4x16x16xf32>
    %222 = math.exp %221 : vector<4x16x16xf32>
    %cst_62 = arith.constant dense<0.000000e+00> : vector<4x16xf32>
    %223 = vector.multi_reduction <add>, %222, %cst_62 [2] : vector<4x16x16xf32> to vector<4x16xf32>
    %224 = vector.shape_cast %223 : vector<4x16xf32> to vector<4x16x1xf32>
    %225 = vector.broadcast %224 : vector<4x16x1xf32> to vector<4x16x16xf32>
    %226 = arith.divf %222, %225 : vector<4x16x16xf32>
    %227 = arith.truncf %226 : vector<4x16x16xf32> to vector<4x16x16xbf16>
    "tpu.trace_start"() <{level = 10 : i32, message = "hqk,hkd->hqd"}> : () -> ()
    %cst_63 = arith.constant dense<0.000000e+00> : vector<4x16x8xf32>
    %228 = tpu.matmul %227, %211, %cst_63 {dimension_numbers = #tpu.dot_dimension_numbers<[2], [1], [1], [2], [0, 0, 0, 1, 1, 2], [0], [0]>} : vector<4x16x16xbf16>, vector<4x16x8xbf16>, vector<4x16x8xf32> -> vector<4x16x8xf32>
    "tpu.trace_stop"() : () -> ()
    %229 = arith.truncf %228 : vector<4x16x8xf32> to vector<4x16x8xbf16>
    "tpu.trace_start"() <{level = 10 : i32, message = "hqd,hdo->hqo"}> : () -> ()
    %cst_64 = arith.constant dense<0.000000e+00> : vector<4x16x32xf32>
    %230 = tpu.matmul %229, %145, %cst_64 {dimension_numbers = #tpu.dot_dimension_numbers<[2], [1], [1], [2], [0, 0, 0, 1, 1, 2], [0], [0]>} : vector<4x16x8xbf16>, vector<4x8x32xbf16>, vector<4x16x32xf32> -> vector<4x16x32xf32>
    "tpu.trace_stop"() : () -> ()
    %cst_65 = arith.constant dense<0.000000e+00> : vector<16x32xf32>
    %231 = vector.multi_reduction <add>, %230, %cst_65 [0] : vector<4x16x32xf32> to vector<16x32xf32>
    %232 = arith.addf %137, %231 : vector<16x32xf32>
    %233 = vector.broadcast %153 : vector<1x32xf32> to vector<16x32xf32>
    %234 = arith.addf %232, %233 : vector<16x32xf32>
    %cst_66 = arith.constant dense<0.000000e+00> : vector<16xf32>
    %235 = vector.multi_reduction <add>, %234, %cst_66 [1] : vector<16x32xf32> to vector<16xf32>
    %236 = vector.shape_cast %235 : vector<16xf32> to vector<16x1xf32>
    %cst_67 = arith.constant 3.200000e+01 : f32
    %237 = vector.broadcast %cst_67 : f32 to vector<16x1xf32>
    %238 = arith.divf %236, %237 : vector<16x1xf32>
    %239 = vector.broadcast %238 : vector<16x1xf32> to vector<16x32xf32>
    %240 = arith.subf %234, %239 : vector<16x32xf32>
    %241 = arith.mulf %240, %240 : vector<16x32xf32>
    %cst_68 = arith.constant dense<0.000000e+00> : vector<16xf32>
    %242 = vector.multi_reduction <add>, %241, %cst_68 [1] : vector<16x32xf32> to vector<16xf32>
    %243 = vector.shape_cast %242 : vector<16xf32> to vector<16x1xf32>
    %cst_69 = arith.constant 3.200000e+01 : f32
    %244 = vector.broadcast %cst_69 : f32 to vector<16x1xf32>
    %245 = arith.divf %243, %244 : vector<16x1xf32>
    %246 = vector.broadcast %238 : vector<16x1xf32> to vector<16x32xf32>
    %247 = arith.subf %234, %246 : vector<16x32xf32>
    %cst_70 = arith.constant 9.99999974E-6 : f32
    %248 = vector.broadcast %cst_70 : f32 to vector<16x1xf32>
    %249 = arith.addf %245, %248 : vector<16x1xf32>
    %250 = math.rsqrt %249 : vector<16x1xf32>
    %251 = vector.broadcast %250 : vector<16x1xf32> to vector<16x32xf32>
    %252 = arith.mulf %247, %251 : vector<16x32xf32>
    %253 = vector.broadcast %150 : vector<1x32xf32> to vector<16x32xf32>
    %254 = arith.mulf %252, %253 : vector<16x32xf32>
    %255 = vector.broadcast %151 : vector<1x32xf32> to vector<16x32xf32>
    %256 = arith.addf %254, %255 : vector<16x32xf32>
    %257 = arith.truncf %256 : vector<16x32xf32> to vector<16x32xbf16>
    %cst_71 = arith.constant dense<0.000000e+00> : vector<16x64xf32>
    %258 = tpu.matmul %257, %141, %cst_71 {dimension_numbers = #tpu.dot_dimension_numbers<[1], [0], [0], [1], [0, 0, 1, 1], [], []>} : vector<16x32xbf16>, vector<32x64xbf16>, vector<16x64xf32> -> vector<16x64xf32>
    %259 = vector.broadcast %154 : vector<1x64xf32> to vector<16x64xf32>
    %260 = arith.addf %258, %259 : vector<16x64xf32>
    %cst_72 = arith.constant 1.702000e+00 : f32
    %261 = vector.broadcast %cst_72 : f32 to vector<16x64xf32>
    %262 = arith.mulf %261, %260 : vector<16x64xf32>
    %263 = arith.negf %262 : vector<16x64xf32>
    %264 = math.exp %263 : vector<16x64xf32>
    %cst_73 = arith.constant 1.000000e+00 : f32
    %265 = vector.broadcast %cst_73 : f32 to vector<16x64xf32>
    %266 = arith.addf %265, %264 : vector<16x64xf32>
    %267 = arith.divf %265, %266 : vector<16x64xf32>
    %268 = arith.mulf %260, %267 : vector<16x64xf32>
    %269 = arith.truncf %268 : vector<16x64xf32> to vector<16x64xbf16>
    "tpu.trace_start"() <{level = 10 : i32, message = "nm,dm->nd"}> : () -> ()
    %cst_74 = arith.constant dense<0.000000e+00> : vector<16x32xf32>
    %270 = tpu.matmul %269, %143, %cst_74 {dimension_numbers = #tpu.dot_dimension_numbers<[1], [1], [0], [0], [0, 0, 1, 0], [], []>} : vector<16x64xbf16>, vector<32x64xbf16>, vector<16x32xf32> -> vector<16x32xf32>
    "tpu.trace_stop"() : () -> ()
    %271 = vector.broadcast %155 : vector<1x32xf32> to vector<16x32xf32>
    %272 = arith.addf %270, %271 : vector<16x32xf32>
    %273 = arith.addf %234, %272 : vector<16x32xf32>
    %c2 = arith.constant 2 : index
    %c0_75 = arith.constant 0 : index
    %c0_76 = arith.constant 0 : index
    %274 = vector.load %arg4[%c2, %c0_75, %c0_76] : memref<3x8x128xf32, #tpu.memory_space<vmem>>, vector<1x8x128xf32>
    %275 = vector.shape_cast %274 : vector<1x8x128xf32> to vector<8x128xf32>
    %276 = vector.extract_strided_slice %275 {offsets = [0, 0], sizes = [1, 32], strides = [1, 1]} : vector<8x128xf32> to vector<1x32xf32>
    %277 = vector.extract_strided_slice %275 {offsets = [1, 0], sizes = [1, 32], strides = [1, 1]} : vector<8x128xf32> to vector<1x32xf32>
    %cst_77 = arith.constant dense<0.000000e+00> : vector<16xf32>
    %278 = vector.multi_reduction <add>, %273, %cst_77 [1] : vector<16x32xf32> to vector<16xf32>
    %279 = vector.shape_cast %278 : vector<16xf32> to vector<16x1xf32>
    %cst_78 = arith.constant 3.200000e+01 : f32
    %280 = vector.broadcast %cst_78 : f32 to vector<16x1xf32>
    %281 = arith.divf %279, %280 : vector<16x1xf32>
    %282 = vector.broadcast %281 : vector<16x1xf32> to vector<16x32xf32>
    %283 = arith.subf %273, %282 : vector<16x32xf32>
    %284 = arith.mulf %283, %283 : vector<16x32xf32>
    %cst_79 = arith.constant dense<0.000000e+00> : vector<16xf32>
    %285 = vector.multi_reduction <add>, %284, %cst_79 [1] : vector<16x32xf32> to vector<16xf32>
    %286 = vector.shape_cast %285 : vector<16xf32> to vector<16x1xf32>
    %cst_80 = arith.constant 3.200000e+01 : f32
    %287 = vector.broadcast %cst_80 : f32 to vector<16x1xf32>
    %288 = arith.divf %286, %287 : vector<16x1xf32>
    %289 = vector.broadcast %281 : vector<16x1xf32> to vector<16x32xf32>
    %290 = arith.subf %273, %289 : vector<16x32xf32>
    %cst_81 = arith.constant 9.99999974E-6 : f32
    %291 = vector.broadcast %cst_81 : f32 to vector<16x1xf32>
    %292 = arith.addf %288, %291 : vector<16x1xf32>
    %293 = math.rsqrt %292 : vector<16x1xf32>
    %294 = vector.broadcast %293 : vector<16x1xf32> to vector<16x32xf32>
    %295 = arith.mulf %290, %294 : vector<16x32xf32>
    %296 = vector.broadcast %276 : vector<1x32xf32> to vector<16x32xf32>
    %297 = arith.mulf %295, %296 : vector<16x32xf32>
    %298 = vector.broadcast %277 : vector<1x32xf32> to vector<16x32xf32>
    %299 = arith.addf %297, %298 : vector<16x32xf32>
    %c0_82 = arith.constant 0 : index
    %c0_83 = arith.constant 0 : index
    %300 = vector.load %arg5[%c0_82, %c0_83] : memref<16x32xf32, #tpu.memory_space<vmem>>, vector<16x32xf32>
    tpu.vector_store %arg5[%c0_82, %c0_83], %299 {strides = array<i32>} : memref<16x32xf32, #tpu.memory_space<vmem>>, vector<16x32xf32>,
    return
  }
}

</mosaic_0001>

<llo_original>
// kernel: neuron_text_encoder_forward.1
$region0: #{neuron_text_encoder_forward.1}
  #allocation0 [shape = 'u32[]', space=smem, size = 0x4, offset = 0x4, fixed_abs, tag = 'smem constant byte address 0x4 - core index']
  #allocation1 [shape = 'u32[144,128]{1,0:T(1,128)}', space=vmem, size = 0x12000, scoped, tag = 'internal scratch']
  %s0 = inlined_call_operand.vmem [shape: f32[16,32], index: 0, kind: input, shape index: {}]
  %s1 = inlined_call_operand.vmem [shape: f32[16,16], index: 1, kind: input, shape index: {}]
  %s2 = inlined_call_operand.vmem [shape: bf16[2,32,256], index: 2, kind: input, shape index: {}]
  %s3 = inlined_call_operand.vmem [shape: bf16[2,4,8,32], index: 3, kind: input, shape index: {}]
  %s4 = inlined_call_operand.vmem [shape: f32[3,8,128], index: 4, kind: input, shape index: {}]
  %s5 = inlined_call_operand.hbm [shape: f32[16,32], index: 5, kind: output, shape index: {}]
  %s6 = sld [smem:[#allocation0]]
  $region30: #{neuron_text_encoder_forward.1} parent=0
    _
  %s8 = ssub.s32 1, %s6
  %s9 = scalar_select 0, %s8, %s6
  $region1: #{neuron_text_encoder_forward.1} parent=0
    #allocation2 [shape = 'u8[8192]{0}', space=vmem, size = 0x2000, scoped, tag = 'output window, operand 0, single buffered']
    #allocation3 [shape = 's32[1]{0}', space=sflag, size = 0x4, scoped, tag = 'scoped memory for neuron_text_encoder_forward.1']
    %10 = vsyncpa [#allocation3], 0
    // Predicated region
    $region2: #{neuron_text_encoder_forward.1} parent=1 // pred_check
      _
    $region3: #{neuron_text_encoder_forward.1} parent=1 // pred_check_branch
      %12 = sbr.rel (0) target = $region5
    $region4: #{neuron_text_encoder_forward.1} parent=1 // pred_region
      _
    $region5: #{neuron_text_encoder_forward.1} parent=1 // pred_fallthru
      _
    // Predicated region
    $region6: #{neuron_text_encoder_forward.1} parent=1 // pred_check
      _
    $region7: #{neuron_text_encoder_forward.1} parent=1 // pred_check_branch
      %14 = sbr.rel (0) target = $region9
    $region8: #{neuron_text_encoder_forward.1} parent=1 // pred_region
      _
    $region9: #{neuron_text_encoder_forward.1} parent=1 // pred_fallthru
      _
    // Predicated region
    $region10: #{neuron_text_encoder_forward.1} parent=1 // pred_check
      _
    $region11: #{neuron_text_encoder_forward.1} parent=1 // pred_check_branch
      %16 = sbr.rel (0) target = $region13
    $region12: #{neuron_text_encoder_forward.1} parent=1 // pred_region
      _
    $region13: #{neuron_text_encoder_forward.1} parent=1 // pred_fallthru
      _
    // Predicated region
    $region14: #{neuron_text_encoder_forward.1} parent=1 // pred_check
      _
    $region15: #{neuron_text_encoder_forward.1} parent=1 // pred_check_branch
      %18 = sbr.rel (0) target = $region17
    $region16: #{neuron_text_encoder_forward.1} parent=1 // pred_region
      _
    $region17: #{neuron_text_encoder_forward.1} parent=1 // pred_fallthru
      _
    // Predicated region
    $region18: #{neuron_text_encoder_forward.1} parent=1 // pred_check
      _
    $region19: #{neuron_text_encoder_forward.1} parent=1 // pred_check_branch
      %20 = sbr.rel (0) target = $region21
    $region20: #{neuron_text_encoder_forward.1} parent=1 // pred_region
      _
    $region21: #{neuron_text_encoder_forward.1} parent=1 // pred_fallthru
      _
    %v22 = vld [vmem:[%s0] sm:$0xff]
    %v23 = vld [vmem:[%s0 + $0x8] sm:$0xff]
    %v24 = vld [vmem:[%s1] sm:$0xff]
    %v25 = vld [vmem:[%s1 + $0x8] sm:$0xff]
    %v26 = vld [vmem:[%s2] sm:$0xf]
    %v27 = vld [vmem:[%s2 + $0x8] sm:$0xf]
    %v28 = vld [vmem:[%s2 + $0x10] sm:$0xf]
    %v29 = vld [vmem:[%s2 + $0x18] sm:$0xf]
    %v30 = vld [vmem:[%s2] sm:$0xff]
    %v31 = vld [vmem:[%s2 + $0x8] sm:$0xff]
    %v32 = vld [vmem:[%s2 + $0x10] sm:$0xff]
    %v33 = vld [vmem:[%s2 + $0x18] sm:$0xff]
    %v34 = vld [vmem:[%s2 + $0x4] sm:$0xf]
    %v35 = vld [vmem:[%s2 + $0xc] sm:$0xf]
    %v36 = vld [vmem:[%s2 + $0x14] sm:$0xf]
    %v37 = vld [vmem:[%s2 + $0x1c] sm:$0xf]
    %v38 = vld [vmem:[%s3] sm:$0xf]
    %v39 = vld [vmem:[%s3 + $0x4] sm:$0xf]
    %v40 = vld [vmem:[%s3 + $0x8] sm:$0xf]
    %v41 = vld [vmem:[%s3 + $0xc] sm:$0xf]
    %v42 = vld [vmem:[%s4] sm:$0xff]
    %vm43 = vcmask 261120
    %v44 = vsel %vm43, %v22, 0.0
    %45 = vadd.xlane.f32.xlu0 %v44
    %v46 = vpop.xlane.xlu0 %45
    %v47 = vsel %vm43, %v23, 0.0
    %48 = vadd.xlane.f32.xlu0 %v47
    %v49 = vpop.xlane.xlu0 %48
    %v50 = vrcp.pop 32.0
    %v51 = vmul.f32 %v46, %v50
    %v52 = vmul.f32 %v49, %v50
    %v53 = vsub.f32 %v22, %v51
    %v54 = vsub.f32 %v23, %v52
    %v55 = vmul.f32 %v53, %v53
    %v56 = vmul.f32 %v54, %v54
    %v57 = vsel %vm43, %v55, 0.0
    %58 = vadd.xlane.f32.xlu0 %v57
    %v59 = vpop.xlane.xlu0 %58
    %v60 = vsel %vm43, %v56, 0.0
    %61 = vadd.xlane.f32.xlu0 %v60
    %v62 = vpop.xlane.xlu0 %61
    %v63 = vmul.f32 %v59, %v50
    %v64 = vmul.f32 %v62, %v50
    %v65 = vadd.f32 %v63, 1e-05
    %v66 = vadd.f32 %v64, 1e-05
    %v67 = vrsqrt.pop %v65
    %v68 = vrsqrt.pop %v66
    %v69 = vmul.f32 %v53, %v67
    %v70 = vmul.f32 %v54, %v68
    %v71 = vlaneseq
    %v72 = vshrl.u32 %v71, 7
    %v73 = vsub.s32 0, %v72
    %v74 = vrot.slane %v42, %v73
    %v75 = vmul.f32 %v69, %v74
    %v76 = vmul.f32 %v70, %v74
    %v77 = vlaneseq
    %v78 = vshrl.u32 %v77, 7
    %v79 = vsub.s32 1, %v78
    %v80 = vrot.slane %v42, %v79
    %v81 = vadd.f32 %v75, %v80
    %v82 = vadd.f32 %v76, %v80
    %v83 = vpack.c.bf16 %v82, %v81
    %v84 = vlaneseq
    %v85 = vshrl.u32 %v84, 7
    %v86 = vsub.s32 4, %v85
    %v87 = vrot.slane %v42, %v86
    %v92 = vunpack.c.l.b16 %v26
    %v93 = vunpack.c.l.b16 %v27
    %v94 = vunpack.c.l.b16 %v28
    %v95 = vunpack.c.l.b16 %v29
    %v96 = vpack.c.b16 %v93, %v92
    %v97 = vpack.c.b16 %v95, %v94
    %v101 = vsel %vm43, %v83, 0
    %103 = vmatprep.subr.bf16.mxu0 0
    %104 = vmatpush1.bf16.msra.mxu0 %v96
    %105 = vmatprep.subr.bf16.mxu0 0
    %106 = vmatpush1.bf16.msra.mxu0 %v97
    %107 = vmatprep.subr.bf16.mxu0 0
    %108 = vmatpush1.bf16.msra.mxu0 0
    %109 = vmatprep.subr.bf16.mxu0 0
    %110 = vmatpush1.bf16.msra.mxu0 0
    %111 = vmatprep.subr.bf16.mxu0 0
    %112 = vmatpush1.bf16.msra.mxu0 0
    %113 = vmatprep.subr.bf16.mxu0 0
    %114 = vmatpush1.bf16.msra.mxu0 0
    %115 = vmatprep.subr.bf16.mxu0 0
    %116 = vmatpush1.bf16.msra.mxu0 0
    %117 = vmatprep.subr.bf16.mxu0 0
    %118 = vmatpush1.bf16.msra.mxu0 0
    %119 = vmatprep.subr.bf16.mxu0 0
    %120 = vmatpush1.bf16.msra.mxu0 0
    %121 = vmatprep.subr.bf16.mxu0 0
    %122 = vmatpush1.bf16.msra.mxu0 0
    %123 = vmatprep.subr.bf16.mxu0 0
    %124 = vmatpush1.bf16.msra.mxu0 0
    %125 = vmatprep.subr.bf16.mxu0 0
    %126 = vmatpush1.bf16.msra.mxu0 0
    %127 = vmatprep.subr.bf16.mxu0 0
    %128 = vmatpush1.bf16.msra.mxu0 0
    %129 = vmatprep.subr.bf16.mxu0 0
    %130 = vmatpush1.bf16.msra.mxu0 0
    %131 = vmatprep.subr.bf16.mxu0 0
    %132 = vmatpush1.bf16.msra.mxu0 0
    %133 = vmatprep.subr.bf16.mxu0 0
    %134 = vmatpush1.bf16.msra.mxu0 0
    %135 = vmatprep.mubr.bf16.mxu0 0
    %136 = vmatmul.mubr.bf16.gmra.mrb[0].mxu0 %v101
    %v137 = vpop.f32.mrb[0].mxu0
    %v138 = vadd.f32 %v87, %v137
    %v139 = vpop.f32.mrb[0].mxu0
    %v140 = vpop.f32.mrb[0].mxu0
    %v141 = vadd.f32 %v87, %v140
    %v142 = vpop.f32.mrb[0].mxu0
    %143 = vdwg.mxu0
    %146 = vrot.lane.b32.xlu0 %v138, 120
    %v147 = vpop.permute.xlu0 %146
    %148 = vrot.lane.b32.xlu0 %v141, 120
    %v149 = vpop.permute.xlu0 %148
    %152 = vrot.lane.b32.xlu0 %v138, 112
    %v153 = vpop.permute.xlu0 %152
    %154 = vrot.lane.b32.xlu0 %v141, 112
    %v155 = vpop.permute.xlu0 %154
    %158 = vrot.lane.b32.xlu0 %v138, 104
    %v159 = vpop.permute.xlu0 %158
    %160 = vrot.lane.b32.xlu0 %v141, 104
    %v161 = vpop.permute.xlu0 %160
    %v164 = vpack.c.bf16 %v141, %v138
    %v165 = vpack.c.bf16 %v149, %v147
    %v166 = vpack.c.bf16 %v155, %v153
    %v167 = vpack.c.bf16 %v161, %v159
    %169 = vrot.lane.b32.xlu0 %v164, 96
    %v170 = vpop.permute.xlu0 %169
    %vm171 = vcmask 64512
    %v173 = vsel %vm171, %v164, 0
    %v176 = vsel %vm171, %v170, 0
    %178 = vmatprep.subr.bf16.mxu0 0
    %179 = vmatpush1.bf16.xpose.msra.mxu0 %v176
    %180 = vmatprep.subr.bf16.mxu0 0
    %181 = vmatpush1.bf16.xpose.msra.mxu0 0
    %182 = vmatprep.subr.bf16.mxu0 0
    %183 = vmatpush1.bf16.xpose.msra.mxu0 0
    %184 = vmatprep.subr.bf16.mxu0 0
    %185 = vmatpush1.bf16.xpose.msra.mxu0 0
    %186 = vmatprep.subr.bf16.mxu0 0
    %187 = vmatpush1.bf16.xpose.msra.mxu0 0
    %188 = vmatprep.subr.bf16.mxu0 0
    %189 = vmatpush1.bf16.xpose.msra.mxu0 0
    %190 = vmatprep.subr.bf16.mxu0 0
    %191 = vmatpush1.bf16.xpose.msra.mxu0 0
    %192 = vmatprep.subr.bf16.mxu0 0
    %193 = vmatpush1.bf16.xpose.msra.mxu0 0
    %194 = vmatprep.subr.bf16.mxu0 0
    %195 = vmatpush1.bf16.xpose.msra.mxu0 0
    %196 = vmatprep.subr.bf16.mxu0 0
    %197 = vmatpush1.bf16.xpose.msra.mxu0 0
    %198 = vmatprep.subr.bf16.mxu0 0
    %199 = vmatpush1.bf16.xpose.msra.mxu0 0
    %200 = vmatprep.subr.bf16.mxu0 0
    %201 = vmatpush1.bf16.xpose.msra.mxu0 0
    %202 = vmatprep.subr.bf16.mxu0 0
    %203 = vmatpush1.bf16.xpose.msra.mxu0 0
    %204 = vmatprep.subr.bf16.mxu0 0
    %205 = vmatpush1.bf16.xpose.msra.mxu0 0
    %206 = vmatprep.subr.bf16.mxu0 0
    %207 = vmatpush1.bf16.xpose.msra.mxu0 0
    %208 = vmatprep.subr.bf16.mxu0 0
    %209 = vmatpush1.bf16.xpose.msra.mxu0 0
    %210 = vmatprep.mubr.bf16.mxu0 0
    %211 = vmatmul.mubr.bf16.gmra.mrb[0].mxu0 %v173
    %v212 = vpop.f32.mrb[0].mxu0
    %v213 = vadd.f32 0.0, %v212
    %v214 = vpop.f32.mrb[0].mxu0
    %v215 = vpop.f32.mrb[0].mxu0
    %v216 = vadd.f32 0.0, %v215
    %v217 = vpop.f32.mrb[0].mxu0
    %218 = vdwg.mxu0
    %220 = vrot.lane.b32.xlu0 %v165, 96
    %v221 = vpop.permute.xlu0 %220
    %v223 = vsel %vm171, %v165, 0
    %v226 = vsel %vm171, %v221, 0
    %228 = vmatprep.subr.bf16.mxu0 0
    %229 = vmatpush1.bf16.xpose.msra.mxu0 %v226
    %230 = vmatprep.subr.bf16.mxu0 0
    %231 = vmatpush1.bf16.xpose.msra.mxu0 0
    %232 = vmatprep.subr.bf16.mxu0 0
    %233 = vmatpush1.bf16.xpose.msra.mxu0 0
    %234 = vmatprep.subr.bf16.mxu0 0
    %235 = vmatpush1.bf16.xpose.msra.mxu0 0
    %236 = vmatprep.subr.bf16.mxu0 0
    %237 = vmatpush1.bf16.xpose.msra.mxu0 0
    %238 = vmatprep.subr.bf16.mxu0 0
    %239 = vmatpush1.bf16.xpose.msra.mxu0 0
    %240 = vmatprep.subr.bf16.mxu0 0
    %241 = vmatpush1.bf16.xpose.msra.mxu0 0
    %242 = vmatprep.subr.bf16.mxu0 0
    %243 = vmatpush1.bf16.xpose.msra.mxu0 0
    %244 = vmatprep.subr.bf16.mxu0 0
    %245 = vmatpush1.bf16.xpose.msra.mxu0 0
    %246 = vmatprep.subr.bf16.mxu0 0
    %247 = vmatpush1.bf16.xpose.msra.mxu0 0
    %248 = vmatprep.subr.bf16.mxu0 0
    %249 = vmatpush1.bf16.xpose.msra.mxu0 0
    %250 = vmatprep.subr.bf16.mxu0 0
    %251 = vmatpush1.bf16.xpose.msra.mxu0 0
    %252 = vmatprep.subr.bf16.mxu0 0
    %253 = vmatpush1.bf16.xpose.msra.mxu0 0
    %254 = vmatprep.subr.bf16.mxu0 0
    %255 = vmatpush1.bf16.xpose.msra.mxu0 0
    %256 = vmatprep.subr.bf16.mxu0 0
    %257 = vmatpush1.bf16.xpose.msra.mxu0 0
    %258 = vmatprep.subr.bf16.mxu0 0
    %259 = vmatpush1.bf16.xpose.msra.mxu0 0
    %260 = vmatprep.mubr.bf16.mxu0 0
    %261 = vmatmul.mubr.bf16.gmra.mrb[0].mxu0 %v223
    %v262 = vpop.f32.mrb[0].mxu0
    %v263 = vadd.f32 0.0, %v262
    %v264 = vpop.f32.mrb[0].mxu0
    %v265 = vpop.f32.mrb[0].mxu0
    %v266 = vadd.f32 0.0, %v265
    %v267 = vpop.f32.mrb[0].mxu0
    %268 = vdwg.mxu0
    %270 = vrot.lane.b32.xlu0 %v166, 96
    %v271 = vpop.permute.xlu0 %270
    %v273 = vsel %vm171, %v166, 0
    %v276 = vsel %vm171, %v271, 0
    %278 = vmatprep.subr.bf16.mxu0 0
    %279 = vmatpush1.bf16.xpose.msra.mxu0 %v276
    %280 = vmatprep.subr.bf16.mxu0 0
    %281 = vmatpush1.bf16.xpose.msra.mxu0 0
    %282 = vmatprep.subr.bf16.mxu0 0
    %283 = vmatpush1.bf16.xpose.msra.mxu0 0
    %284 = vmatprep.subr.bf16.mxu0 0
    %285 = vmatpush1.bf16.xpose.msra.mxu0 0
    %286 = vmatprep.subr.bf16.mxu0 0
    %287 = vmatpush1.bf16.xpose.msra.mxu0 0
    %288 = vmatprep.subr.bf16.mxu0 0
    %289 = vmatpush1.bf16.xpose.msra.mxu0 0
    %290 = vmatprep.subr.bf16.mxu0 0
    %291 = vmatpush1.bf16.xpose.msra.mxu0 0
    %292 = vmatprep.subr.bf16.mxu0 0
    %293 = vmatpush1.bf16.xpose.msra.mxu0 0
    %294 = vmatprep.subr.bf16.mxu0 0
    %295 = vmatpush1.bf16.xpose.msra.mxu0 0
    %296 = vmatprep.subr.bf16.mxu0 0
    %297 = vmatpush1.bf16.xpose.msra.mxu0 0
    %298 = vmatprep.subr.bf16.mxu0 0
    %299 = vmatpush1.bf16.xpose.msra.mxu0 0
    %300 = vmatprep.subr.bf16.mxu0 0
    %301 = vmatpush1.bf16.xpose.msra.mxu0 0
    %302 = vmatprep.subr.bf16.mxu0 0
    %303 = vmatpush1.bf16.xpose.msra.mxu0 0
    %304 = vmatprep.subr.bf16.mxu0 0
    %305 = vmatpush1.bf16.xpose.msra.mxu0 0
    %306 = vmatprep.subr.bf16.mxu0 0
    %307 = vmatpush1.bf16.xpose.msra.mxu0 0
    %308 = vmatprep.subr.bf16.mxu0 0
    %309 = vmatpush1.bf16.xpose.msra.mxu0 0
    %310 = vmatprep.mubr.bf16.mxu0 0
    %311 = vmatmul.mubr.bf16.gmra.mrb[0].mxu0 %v273
    %v312 = vpop.f32.mrb[0].mxu0
    %v313 = vadd.f32 0.0, %v312
    %v314 = vpop.f32.mrb[0].mxu0
    %v315 = vpop.f32.mrb[0].mxu0
    %v316 = vadd.f32 0.0, %v315
    %v317 = vpop.f32.mrb[0].mxu0
    %318 = vdwg.mxu0
    %320 = vrot.lane.b32.xlu0 %v167, 96
    %v321 = vpop.permute.xlu0 %320
    %v323 = vsel %vm171, %v167, 0
    %v326 = vsel %vm171, %v321, 0
    %328 = vmatprep.subr.bf16.mxu0 0
    %329 = vmatpush1.bf16.xpose.msra.mxu0 %v326
    %330 = vmatprep.subr.bf16.mxu0 0
    %331 = vmatpush1.bf16.xpose.msra.mxu0 0
    %332 = vmatprep.subr.bf16.mxu0 0
    %333 = vmatpush1.bf16.xpose.msra.mxu0 0
    %334 = vmatprep.subr.bf16.mxu0 0
    %335 = vmatpush1.bf16.xpose.msra.mxu0 0
    %336 = vmatprep.subr.bf16.mxu0 0
    %337 = vmatpush1.bf16.xpose.msra.mxu0 0
    %338 = vmatprep.subr.bf16.mxu0 0
    %339 = vmatpush1.bf16.xpose.msra.mxu0 0
    %340 = vmatprep.subr.bf16.mxu0 0
    %341 = vmatpush1.bf16.xpose.msra.mxu0 0
    %342 = vmatprep.subr.bf16.mxu0 0
    %343 = vmatpush1.bf16.xpose.msra.mxu0 0
    %344 = vmatprep.subr.bf16.mxu0 0
    %345 = vmatpush1.bf16.xpose.msra.mxu0 0
    %346 = vmatprep.subr.bf16.mxu0 0
    %347 = vmatpush1.bf16.xpose.msra.mxu0 0
    %348 = vmatprep.subr.bf16.mxu0 0
    %349 = vmatpush1.bf16.xpose.msra.mxu0 0
    %350 = vmatprep.subr.bf16.mxu0 0
    %351 = vmatpush1.bf16.xpose.msra.mxu0 0
    %352 = vmatprep.subr.bf16.mxu0 0
    %353 = vmatpush1.bf16.xpose.msra.mxu0 0
    %354 = vmatprep.subr.bf16.mxu0 0
    %355 = vmatpush1.bf16.xpose.msra.mxu0 0
    %356 = vmatprep.subr.bf16.mxu0 0
    %357 = vmatpush1.bf16.xpose.msra.mxu0 0
    %358 = vmatprep.subr.bf16.mxu0 0
    %359 = vmatpush1.bf16.xpose.msra.mxu0 0
    %360 = vmatprep.mubr.bf16.mxu0 0
    %361 = vmatmul.mubr.bf16.gmra.mrb[0].mxu0 %v323
    %v362 = vpop.f32.mrb[0].mxu0
    %v363 = vadd.f32 0.0, %v362
    %v364 = vpop.f32.mrb[0].mxu0
    %v365 = vpop.f32.mrb[0].mxu0
    %v366 = vadd.f32 0.0, %v365
    %v367 = vpop.f32.mrb[0].mxu0
    %368 = vdwg.mxu0
    %v369 = vmul.f32 %v213, 0.35355338
    %v370 = vmul.f32 %v216, 0.35355338
    %v371 = vmul.f32 %v263, 0.35355338
    %v372 = vmul.f32 %v266, 0.35355338
    %v373 = vmul.f32 %v313, 0.35355338
    %v374 = vmul.f32 %v316, 0.35355338
    %v375 = vmul.f32 %v363, 0.35355338
    %v376 = vmul.f32 %v366, 0.35355338
    %v377 = vadd.f32 %v369, %v24
    %v378 = vadd.f32 %v370, %v25
    %v379 = vadd.f32 %v371, %v24
    %v380 = vadd.f32 %v372, %v25
    %v381 = vadd.f32 %v373, %v24
    %v382 = vadd.f32 %v374, %v25
    %v383 = vadd.f32 %v375, %v24
    %v384 = vadd.f32 %v376, %v25
    %vm385 = vcmask 130048
    %v386 = vsel %vm385, %v377, -inf
    %387 = vmax.xlane.f32.xlu0 %v386
    %v388 = vpop.xlane.xlu0 %387
    %v389 = vsel %vm385, %v378, -inf
    %390 = vmax.xlane.f32.xlu0 %v389
    %v391 = vpop.xlane.xlu0 %390
    %v392 = vsel %vm385, %v379, -inf
    %393 = vmax.xlane.f32.xlu0 %v392
    %v394 = vpop.xlane.xlu0 %393
    %v395 = vsel %vm385, %v380, -inf
    %396 = vmax.xlane.f32.xlu0 %v395
    %v397 = vpop.xlane.xlu0 %396
    %v398 = vsel %vm385, %v381, -inf
    %399 = vmax.xlane.f32.xlu0 %v398
    %v400 = vpop.xlane.xlu0 %399
    %v401 = vsel %vm385, %v382, -inf
    %402 = vmax.xlane.f32.xlu0 %v401
    %v403 = vpop.xlane.xlu0 %402
    %v404 = vsel %vm385, %v383, -inf
    %405 = vmax.xlane.f32.xlu0 %v404
    %v406 = vpop.xlane.xlu0 %405
    %v407 = vsel %vm385, %v384, -inf
    %408 = vmax.xlane.f32.xlu0 %v407
    %v409 = vpop.xlane.xlu0 %408
    %v410 = vsub.f32 %v377, %v388
    %v411 = vsub.f32 %v378, %v391
    %v412 = vsub.f32 %v379, %v394
    %v413 = vsub.f32 %v380, %v397
    %v414 = vsub.f32 %v381, %v400
    %v415 = vsub.f32 %v382, %v403
    %v416 = vsub.f32 %v383, %v406
    %v417 = vsub.f32 %v384, %v409
    %v418 = vmul.f32 %v410, 1.442695
    %v419 = vpow.pop %v418
    %v420 = vmul.f32 %v411, 1.442695
    %v421 = vpow.pop %v420
    %v422 = vmul.f32 %v412, 1.442695
    %v423 = vpow.pop %v422
    %v424 = vmul.f32 %v413, 1.442695
    %v425 = vpow.pop %v424
    %v426 = vmul.f32 %v414, 1.442695
    %v427 = vpow.pop %v426
    %v428 = vmul.f32 %v415, 1.442695
    %v429 = vpow.pop %v428
    %v430 = vmul.f32 %v416, 1.442695
    %v431 = vpow.pop %v430
    %v432 = vmul.f32 %v417, 1.442695
    %v433 = vpow.pop %v432
    %v434 = vsel %vm385, %v419, 0.0
    %435 = vadd.xlane.f32.xlu0 %v434
    %v436 = vpop.xlane.xlu0 %435
    %v437 = vsel %vm385, %v421, 0.0
    %438 = vadd.xlane.f32.xlu0 %v437
    %v439 = vpop.xlane.xlu0 %438
    %v440 = vsel %vm385, %v423, 0.0
    %441 = vadd.xlane.f32.xlu0 %v440
    %v442 = vpop.xlane.xlu0 %441
    %v443 = vsel %vm385, %v425, 0.0
    %444 = vadd.xlane.f32.xlu0 %v443
    %v445 = vpop.xlane.xlu0 %444
    %v446 = vsel %vm385, %v427, 0.0
    %447 = vadd.xlane.f32.xlu0 %v446
    %v448 = vpop.xlane.xlu0 %447
    %v449 = vsel %vm385, %v429, 0.0
    %450 = vadd.xlane.f32.xlu0 %v449
    %v451 = vpop.xlane.xlu0 %450
    %v452 = vsel %vm385, %v431, 0.0
    %453 = vadd.xlane.f32.xlu0 %v452
    %v454 = vpop.xlane.xlu0 %453
    %v455 = vsel %vm385, %v433, 0.0
    %456 = vadd.xlane.f32.xlu0 %v455
    %v457 = vpop.xlane.xlu0 %456
    %v458 = vrcp.pop %v436
    %v459 = vmul.f32 %v419, %v458
    %v460 = vrcp.pop %v439
    %v461 = vmul.f32 %v421, %v460
    %v462 = vrcp.pop %v442
    %v463 = vmul.f32 %v423, %v462
    %v464 = vrcp.pop %v445
    %v465 = vmul.f32 %v425, %v464
    %v466 = vrcp.pop %v448
    %v467 = vmul.f32 %v427, %v466
    %v468 = vrcp.pop %v451
    %v469 = vmul.f32 %v429, %v468
    %v470 = vrcp.pop %v454
    %v471 = vmul.f32 %v431, %v470
    %v472 = vrcp.pop %v457
    %v473 = vmul.f32 %v433, %v472
    %v474 = vpack.c.bf16 %v461, %v459
    %v475 = vpack.c.bf16 %v465, %v463
    %v476 = vpack.c.bf16 %v469, %v467
    %v477 = vpack.c.bf16 %v473, %v471
    %478 = vrot.lane.b32.xlu0 %v164, 64
    %v479 = vpop.permute.xlu0 %478
    %v482 = vsel %vm385, %v474, 0
    %484 = vmatprep.subr.bf16.mxu0 0
    %485 = vmatpush1.bf16.msra.mxu0 %v479
    %486 = vmatprep.subr.bf16.mxu0 0
    %487 = vmatpush1.bf16.msra.mxu0 0
    %488 = vmatprep.subr.bf16.mxu0 0
    %489 = vmatpush1.bf16.msra.mxu0 0
    %490 = vmatprep.subr.bf16.mxu0 0
    %491 = vmatpush1.bf16.msra.mxu0 0
    %492 = vmatprep.subr.bf16.mxu0 0
    %493 = vmatpush1.bf16.msra.mxu0 0
    %494 = vmatprep.subr.bf16.mxu0 0
    %495 = vmatpush1.bf16.msra.mxu0 0
    %496 = vmatprep.subr.bf16.mxu0 0
    %497 = vmatpush1.bf16.msra.mxu0 0
    %498 = vmatprep.subr.bf16.mxu0 0
    %499 = vmatpush1.bf16.msra.mxu0 0
    %500 = vmatprep.subr.bf16.mxu0 0
    %501 = vmatpush1.bf16.msra.mxu0 0
    %502 = vmatprep.subr.bf16.mxu0 0
    %503 = vmatpush1.bf16.msra.mxu0 0
    %504 = vmatprep.subr.bf16.mxu0 0
    %505 = vmatpush1.bf16.msra.mxu0 0
    %506 = vmatprep.subr.bf16.mxu0 0
    %507 = vmatpush1.bf16.msra.mxu0 0
    %508 = vmatprep.subr.bf16.mxu0 0
    %509 = vmatpush1.bf16.msra.mxu0 0
    %510 = vmatprep.subr.bf16.mxu0 0
    %511 = vmatpush1.bf16.msra.mxu0 0
    %512 = vmatprep.subr.bf16.mxu0 0
    %513 = vmatpush1.bf16.msra.mxu0 0
    %514 = vmatprep.subr.bf16.mxu0 0
    %515 = vmatpush1.bf16.msra.mxu0 0
    %516 = vmatprep.mubr.bf16.mxu0 0
    %517 = vmatmul.mubr.bf16.gmra.mrb[0].mxu0 %v482
    %v518 = vpop.f32.mrb[0].mxu0
    %v519 = vadd.f32 0.0, %v518
    %v520 = vpop.f32.mrb[0].mxu0
    %v521 = vpop.f32.mrb[0].mxu0
    %v522 = vadd.f32 0.0, %v521
    %v523 = vpop.f32.mrb[0].mxu0
    %524 = vdwg.mxu0
    %525 = vrot.lane.b32.xlu0 %v165, 64
    %v526 = vpop.permute.xlu0 %525
    %v529 = vsel %vm385, %v475, 0
    %531 = vmatprep.subr.bf16.mxu0 0
    %532 = vmatpush1.bf16.msra.mxu0 %v526
    %533 = vmatprep.subr.bf16.mxu0 0
    %534 = vmatpush1.bf16.msra.mxu0 0
    %535 = vmatprep.subr.bf16.mxu0 0
    %536 = vmatpush1.bf16.msra.mxu0 0
    %537 = vmatprep.subr.bf16.mxu0 0
    %538 = vmatpush1.bf16.msra.mxu0 0
    %539 = vmatprep.subr.bf16.mxu0 0
    %540 = vmatpush1.bf16.msra.mxu0 0
    %541 = vmatprep.subr.bf16.mxu0 0
    %542 = vmatpush1.bf16.msra.mxu0 0
    %543 = vmatprep.subr.bf16.mxu0 0
    %544 = vmatpush1.bf16.msra.mxu0 0
    %545 = vmatprep.subr.bf16.mxu0 0
    %546 = vmatpush1.bf16.msra.mxu0 0
    %547 = vmatprep.subr.bf16.mxu0 0
    %548 = vmatpush1.bf16.msra.mxu0 0
    %549 = vmatprep.subr.bf16.mxu0 0
    %550 = vmatpush1.bf16.msra.mxu0 0
    %551 = vmatprep.subr.bf16.mxu0 0
    %552 = vmatpush1.bf16.msra.mxu0 0
    %553 = vmatprep.subr.bf16.mxu0 0
    %554 = vmatpush1.bf16.msra.mxu0 0
    %555 = vmatprep.subr.bf16.mxu0 0
    %556 = vmatpush1.bf16.msra.mxu0 0
    %557 = vmatprep.subr.bf16.mxu0 0
    %558 = vmatpush1.bf16.msra.mxu0 0
    %559 = vmatprep.subr.bf16.mxu0 0
    %560 = vmatpush1.bf16.msra.mxu0 0
    %561 = vmatprep.subr.bf16.mxu0 0
    %562 = vmatpush1.bf16.msra.mxu0 0
    %563 = vmatprep.mubr.bf16.mxu0 0
    %564 = vmatmul.mubr.bf16.gmra.mrb[0].mxu0 %v529
    %v565 = vpop.f32.mrb[0].mxu0
    %v566 = vadd.f32 0.0, %v565
    %v567 = vpop.f32.mrb[0].mxu0
    %v568 = vpop.f32.mrb[0].mxu0
    %v569 = vadd.f32 0.0, %v568
    %v570 = vpop.f32.mrb[0].mxu0
    %571 = vdwg.mxu0
    %572 = vrot.lane.b32.xlu0 %v166, 64
    %v573 = vpop.permute.xlu0 %572
    %v576 = vsel %vm385, %v476, 0
    %578 = vmatprep.subr.bf16.mxu0 0
    %579 = vmatpush1.bf16.msra.mxu0 %v573
    %580 = vmatprep.subr.bf16.mxu0 0
    %581 = vmatpush1.bf16.msra.mxu0 0
    %582 = vmatprep.subr.bf16.mxu0 0
    %583 = vmatpush1.bf16.msra.mxu0 0
    %584 = vmatprep.subr.bf16.mxu0 0
    %585 = vmatpush1.bf16.msra.mxu0 0
    %586 = vmatprep.subr.bf16.mxu0 0
    %587 = vmatpush1.bf16.msra.mxu0 0
    %588 = vmatprep.subr.bf16.mxu0 0
    %589 = vmatpush1.bf16.msra.mxu0 0
    %590 = vmatprep.subr.bf16.mxu0 0
    %591 = vmatpush1.bf16.msra.mxu0 0
    %592 = vmatprep.subr.bf16.mxu0 0
    %593 = vmatpush1.bf16.msra.mxu0 0
    %594 = vmatprep.subr.bf16.mxu0 0
    %595 = vmatpush1.bf16.msra.mxu0 0
    %596 = vmatprep.subr.bf16.mxu0 0
    %597 = vmatpush1.bf16.msra.mxu0 0
    %598 = vmatprep.subr.bf16.mxu0 0
    %599 = vmatpush1.bf16.msra.mxu0 0
    %600 = vmatprep.subr.bf16.mxu0 0
    %601 = vmatpush1.bf16.msra.mxu0 0
    %602 = vmatprep.subr.bf16.mxu0 0
    %603 = vmatpush1.bf16.msra.mxu0 0
    %604 = vmatprep.subr.bf16.mxu0 0
    %605 = vmatpush1.bf16.msra.mxu0 0
    %606 = vmatprep.subr.bf16.mxu0 0
    %607 = vmatpush1.bf16.msra.mxu0 0
    %608 = vmatprep.subr.bf16.mxu0 0
    %609 = vmatpush1.bf16.msra.mxu0 0
    %610 = vmatprep.mubr.bf16.mxu0 0
    %611 = vmatmul.mubr.bf16.gmra.mrb[0].mxu0 %v576
    %v612 = vpop.f32.mrb[0].mxu0
    %v613 = vadd.f32 0.0, %v612
    %v614 = vpop.f32.mrb[0].mxu0
    %v615 = vpop.f32.mrb[0].mxu0
    %v616 = vadd.f32 0.0, %v615
    %v617 = vpop.f32.mrb[0].mxu0
    %618 = vdwg.mxu0
    %619 = vrot.lane.b32.xlu0 %v167, 64
    %v620 = vpop.permute.xlu0 %619
    %v623 = vsel %vm385, %v477, 0
    %625 = vmatprep.subr.bf16.mxu0 0
    %626 = vmatpush1.bf16.msra.mxu0 %v620
    %627 = vmatprep.subr.bf16.mxu0 0
    %628 = vmatpush1.bf16.msra.mxu0 0
    %629 = vmatprep.subr.bf16.mxu0 0
    %630 = vmatpush1.bf16.msra.mxu0 0
    %631 = vmatprep.subr.bf16.mxu0 0
    %632 = vmatpush1.bf16.msra.mxu0 0
    %633 = vmatprep.subr.bf16.mxu0 0
    %634 = vmatpush1.bf16.msra.mxu0 0
    %635 = vmatprep.subr.bf16.mxu0 0
    %636 = vmatpush1.bf16.msra.mxu0 0
    %637 = vmatprep.subr.bf16.mxu0 0
    %638 = vmatpush1.bf16.msra.mxu0 0
    %639 = vmatprep.subr.bf16.mxu0 0
    %640 = vmatpush1.bf16.msra.mxu0 0
    %641 = vmatprep.subr.bf16.mxu0 0
    %642 = vmatpush1.bf16.msra.mxu0 0
    %643 = vmatprep.subr.bf16.mxu0 0
    %644 = vmatpush1.bf16.msra.mxu0 0
    %645 = vmatprep.subr.bf16.mxu0 0
    %646 = vmatpush1.bf16.msra.mxu0 0
    %647 = vmatprep.subr.bf16.mxu0 0
    %648 = vmatpush1.bf16.msra.mxu0 0
    %649 = vmatprep.subr.bf16.mxu0 0
    %650 = vmatpush1.bf16.msra.mxu0 0
    %651 = vmatprep.subr.bf16.mxu0 0
    %652 = vmatpush1.bf16.msra.mxu0 0
    %653 = vmatprep.subr.bf16.mxu0 0
    %654 = vmatpush1.bf16.msra.mxu0 0
    %655 = vmatprep.subr.bf16.mxu0 0
    %656 = vmatpush1.bf16.msra.mxu0 0
    %657 = vmatprep.mubr.bf16.mxu0 0
    %658 = vmatmul.mubr.bf16.gmra.mrb[0].mxu0 %v623
    %v659 = vpop.f32.mrb[0].mxu0
    %v660 = vadd.f32 0.0, %v659
    %v661 = vpop.f32.mrb[0].mxu0
    %v662 = vpop.f32.mrb[0].mxu0
    %v663 = vadd.f32 0.0, %v662
    %v664 = vpop.f32.mrb[0].mxu0
    %665 = vdwg.mxu0
    %v666 = vpack.c.bf16 %v522, %v519
    %v667 = vpack.c.bf16 %v569, %v566
    %v668 = vpack.c.bf16 %v616, %v613
    %v669 = vpack.c.bf16 %v663, %v660
    %v671 = vsel %vm171, %v666, 0
    %vm673 = vcmask 1043456
    %v675 = vsel %vm673, %v38, 0
    %677 = vmatprep.subr.bf16.mxu0 0
    %678 = vmatpush1.bf16.msra.mxu0 %v675
    %679 = vmatprep.subr.bf16.mxu0 0
    %680 = vmatpush1.bf16.msra.mxu0 0
    %681 = vmatprep.subr.bf16.mxu0 0
    %682 = vmatpush1.bf16.msra.mxu0 0
    %683 = vmatprep.subr.bf16.mxu0 0
    %684 = vmatpush1.bf16.msra.mxu0 0
    %685 = vmatprep.subr.bf16.mxu0 0
    %686 = vmatpush1.bf16.msra.mxu0 0
    %687 = vmatprep.subr.bf16.mxu0 0
    %688 = vmatpush1.bf16.msra.mxu0 0
    %689 = vmatprep.subr.bf16.mxu0 0
    %690 = vmatpush1.bf16.msra.mxu0 0
    %691 = vmatprep.subr.bf16.mxu0 0
    %692 = vmatpush1.bf16.msra.mxu0 0
    %693 = vmatprep.subr.bf16.mxu0 0
    %694 = vmatpush1.bf16.msra.mxu0 0
    %695 = vmatprep.subr.bf16.mxu0 0
    %696 = vmatpush1.bf16.msra.mxu0 0
    %697 = vmatprep.subr.bf16.mxu0 0
    %698 = vmatpush1.bf16.msra.mxu0 0
    %699 = vmatprep.subr.bf16.mxu0 0
    %700 = vmatpush1.bf16.msra.mxu0 0
    %701 = vmatprep.subr.bf16.mxu0 0
    %702 = vmatpush1.bf16.msra.mxu0 0
    %703 = vmatprep.subr.bf16.mxu0 0
    %704 = vmatpush1.bf16.msra.mxu0 0
    %705 = vmatprep.subr.bf16.mxu0 0
    %706 = vmatpush1.bf16.msra.mxu0 0
    %707 = vmatprep.subr.bf16.mxu0 0
    %708 = vmatpush1.bf16.msra.mxu0 0
    %709 = vmatprep.mubr.bf16.mxu0 0
    %710 = vmatmul.mubr.bf16.gmra.mrb[0].mxu0 %v671
    %v711 = vpop.f32.mrb[0].mxu0
    %v712 = vadd.f32 0.0, %v711
    %v713 = vpop.f32.mrb[0].mxu0
    %v714 = vpop.f32.mrb[0].mxu0
    %v715 = vadd.f32 0.0, %v714
    %v716 = vpop.f32.mrb[0].mxu0
    %717 = vdwg.mxu0
    %v719 = vsel %vm171, %v667, 0
    %v722 = vsel %vm673, %v39, 0
    %724 = vmatprep.subr.bf16.mxu0 0
    %725 = vmatpush1.bf16.msra.mxu0 %v722
    %726 = vmatprep.subr.bf16.mxu0 0
    %727 = vmatpush1.bf16.msra.mxu0 0
    %728 = vmatprep.subr.bf16.mxu0 0
    %729 = vmatpush1.bf16.msra.mxu0 0
    %730 = vmatprep.subr.bf16.mxu0 0
    %731 = vmatpush1.bf16.msra.mxu0 0
    %732 = vmatprep.subr.bf16.mxu0 0
    %733 = vmatpush1.bf16.msra.mxu0 0
    %734 = vmatprep.subr.bf16.mxu0 0
    %735 = vmatpush1.bf16.msra.mxu0 0
    %736 = vmatprep.subr.bf16.mxu0 0
    %737 = vmatpush1.bf16.msra.mxu0 0
    %738 = vmatprep.subr.bf16.mxu0 0
    %739 = vmatpush1.bf16.msra.mxu0 0
    %740 = vmatprep.subr.bf16.mxu0 0
    %741 = vmatpush1.bf16.msra.mxu0 0
    %742 = vmatprep.subr.bf16.mxu0 0
    %743 = vmatpush1.bf16.msra.mxu0 0
    %744 = vmatprep.subr.bf16.mxu0 0
    %745 = vmatpush1.bf16.msra.mxu0 0
    %746 = vmatprep.subr.bf16.mxu0 0
    %747 = vmatpush1.bf16.msra.mxu0 0
    %748 = vmatprep.subr.bf16.mxu0 0
    %749 = vmatpush1.bf16.msra.mxu0 0
    %750 = vmatprep.subr.bf16.mxu0 0
    %751 = vmatpush1.bf16.msra.mxu0 0
    %752 = vmatprep.subr.bf16.mxu0 0
    %753 = vmatpush1.bf16.msra.mxu0 0
    %754 = vmatprep.subr.bf16.mxu0 0
    %755 = vmatpush1.bf16.msra.mxu0 0
    %756 = vmatprep.mubr.bf16.mxu0 0
    %757 = vmatmul.mubr.bf16.gmra.mrb[0].mxu0 %v719
    %v758 = vpop.f32.mrb[0].mxu0
    %v759 = vadd.f32 0.0, %v758
    %v760 = vpop.f32.mrb[0].mxu0
    %v761 = vpop.f32.mrb[0].mxu0
    %v762 = vadd.f32 0.0, %v761
    %v763 = vpop.f32.mrb[0].mxu0
    %764 = vdwg.mxu0
    %v766 = vsel %vm171, %v668, 0
    %v769 = vsel %vm673, %v40, 0
    %771 = vmatprep.subr.bf16.mxu0 0
    %772 = vmatpush1.bf16.msra.mxu0 %v769
    %773 = vmatprep.subr.bf16.mxu0 0
    %774 = vmatpush1.bf16.msra.mxu0 0
    %775 = vmatprep.subr.bf16.mxu0 0
    %776 = vmatpush1.bf16.msra.mxu0 0
    %777 = vmatprep.subr.bf16.mxu0 0
    %778 = vmatpush1.bf16.msra.mxu0 0
    %779 = vmatprep.subr.bf16.mxu0 0
    %780 = vmatpush1.bf16.msra.mxu0 0
    %781 = vmatprep.subr.bf16.mxu0 0
    %782 = vmatpush1.bf16.msra.mxu0 0
    %783 = vmatprep.subr.bf16.mxu0 0
    %784 = vmatpush1.bf16.msra.mxu0 0
    %785 = vmatprep.subr.bf16.mxu0 0
    %786 = vmatpush1.bf16.msra.mxu0 0
    %787 = vmatprep.subr.bf16.mxu0 0
    %788 = vmatpush1.bf16.msra.mxu0 0
    %789 = vmatprep.subr.bf16.mxu0 0
    %790 = vmatpush1.bf16.msra.mxu0 0
    %791 = vmatprep.subr.bf16.mxu0 0
    %792 = vmatpush1.bf16.msra.mxu0 0
    %793 = vmatprep.subr.bf16.mxu0 0
    %794 = vmatpush1.bf16.msra.mxu0 0
    %795 = vmatprep.subr.bf16.mxu0 0
    %796 = vmatpush1.bf16.msra.mxu0 0
    %797 = vmatprep.subr.bf16.mxu0 0
    %798 = vmatpush1.bf16.msra.mxu0 0
    %799 = vmatprep.subr.bf16.mxu0 0
    %800 = vmatpush1.bf16.msra.mxu0 0
    %801 = vmatprep.subr.bf16.mxu0 0
    %802 = vmatpush1.bf16.msra.mxu0 0
    %803 = vmatprep.mubr.bf16.mxu0 0
    %804 = vmatmul.mubr.bf16.gmra.mrb[0].mxu0 %v766
    %v805 = vpop.f32.mrb[0].mxu0
    %v806 = vadd.f32 0.0, %v805
    %v807 = vpop.f32.mrb[0].mxu0
    %v808 = vpop.f32.mrb[0].mxu0
    %v809 = vadd.f32 0.0, %v808
    %v810 = vpop.f32.mrb[0].mxu0
    %811 = vdwg.mxu0
    %v813 = vsel %vm171, %v669, 0
    %v816 = vsel %vm673, %v41, 0
    %818 = vmatprep.subr.bf16.mxu0 0
    %819 = vmatpush1.bf16.msra.mxu0 %v816
    %820 = vmatprep.subr.bf16.mxu0 0
    %821 = vmatpush1.bf16.msra.mxu0 0
    %822 = vmatprep.subr.bf16.mxu0 0
    %823 = vmatpush1.bf16.msra.mxu0 0
    %824 = vmatprep.subr.bf16.mxu0 0
    %825 = vmatpush1.bf16.msra.mxu0 0
    %826 = vmatprep.subr.bf16.mxu0 0
    %827 = vmatpush1.bf16.msra.mxu0 0
    %828 = vmatprep.subr.bf16.mxu0 0
    %829 = vmatpush1.bf16.msra.mxu0 0
    %830 = vmatprep.subr.bf16.mxu0 0
    %831 = vmatpush1.bf16.msra.mxu0 0
    %832 = vmatprep.subr.bf16.mxu0 0
    %833 = vmatpush1.bf16.msra.mxu0 0
    %834 = vmatprep.subr.bf16.mxu0 0
    %835 = vmatpush1.bf16.msra.mxu0 0
    %836 = vmatprep.subr.bf16.mxu0 0
    %837 = vmatpush1.bf16.msra.mxu0 0
    %838 = vmatprep.subr.bf16.mxu0 0
    %839 = vmatpush1.bf16.msra.mxu0 0
    %840 = vmatprep.subr.bf16.mxu0 0
    %841 = vmatpush1.bf16.msra.mxu0 0
    %842 = vmatprep.subr.bf16.mxu0 0
    %843 = vmatpush1.bf16.msra.mxu0 0
    %844 = vmatprep.subr.bf16.mxu0 0
    %845 = vmatpush1.bf16.msra.mxu0 0
    %846 = vmatprep.subr.bf16.mxu0 0
    %847 = vmatpush1.bf16.msra.mxu0 0
    %848 = vmatprep.subr.bf16.mxu0 0
    %849 = vmatpush1.bf16.msra.mxu0 0
    %850 = vmatprep.mubr.bf16.mxu0 0
    %851 = vmatmul.mubr.bf16.gmra.mrb[0].mxu0 %v813
    %v852 = vpop.f32.mrb[0].mxu0
    %v853 = vadd.f32 0.0, %v852
    %v854 = vpop.f32.mrb[0].mxu0
    %v855 = vpop.f32.mrb[0].mxu0
    %v856 = vadd.f32 0.0, %v855
    %v857 = vpop.f32.mrb[0].mxu0
    %858 = vdwg.mxu0
    %v859 = vsel %vm43, %v712, 0.0
    %v860 = vsel %vm43, %v759, 0.0
    %v861 = vadd.f32 %v859, %v860
    %v862 = vsel %vm43, %v806, 0.0
    %v863 = vadd.f32 %v861, %v862
    %v864 = vsel %vm43, %v853, 0.0
    %v865 = vadd.f32 %v863, %v864
    %v866 = vsel %vm43, %v715, 0.0
    %v867 = vsel %vm43, %v762, 0.0
    %v868 = vadd.f32 %v866, %v867
    %v869 = vsel %vm43, %v809, 0.0
    %v870 = vadd.f32 %v868, %v869
    %v871 = vsel %vm43, %v856, 0.0
    %v872 = vadd.f32 %v870, %v871
    %v873 = vadd.f32 %v22, %v865
    %v874 = vadd.f32 %v23, %v872
    %v875 = vlaneseq
    %v876 = vshrl.u32 %v875, 7
    %v877 = vsub.s32 5, %v876
    %v878 = vrot.slane %v42, %v877
    %v879 = vadd.f32 %v873, %v878
    %v880 = vadd.f32 %v874, %v878
    %v881 = vsel %vm43, %v879, 0.0
    %882 = vadd.xlane.f32.xlu0 %v881
    %v883 = vpop.xlane.xlu0 %882
    %v884 = vsel %vm43, %v880, 0.0
    %885 = vadd.xlane.f32.xlu0 %v884
    %v886 = vpop.xlane.xlu0 %885
    %v887 = vmul.f32 %v883, %v50
    %v888 = vmul.f32 %v886, %v50
    %v889 = vsub.f32 %v879, %v887
    %v890 = vsub.f32 %v880, %v888
    %v891 = vmul.f32 %v889, %v889
    %v892 = vmul.f32 %v890, %v890
    %v893 = vsel %vm43, %v891, 0.0
    %894 = vadd.xlane.f32.xlu0 %v893
    %v895 = vpop.xlane.xlu0 %894
    %v896 = vsel %vm43, %v892, 0.0
    %897 = vadd.xlane.f32.xlu0 %v896
    %v898 = vpop.xlane.xlu0 %897
    %v899 = vmul.f32 %v895, %v50
    %v900 = vmul.f32 %v898, %v50
    %v901 = vadd.f32 %v899, 1e-05
    %v902 = vadd.f32 %v900, 1e-05
    %v903 = vrsqrt.pop %v901
    %v904 = vrsqrt.pop %v902
    %v905 = vmul.f32 %v889, %v903
    %v906 = vmul.f32 %v890, %v904
    %v907 = vlaneseq
    %v908 = vshrl.u32 %v907, 7
    %v909 = vsub.s32 2, %v908
    %v910 = vrot.slane %v42, %v909
    %v911 = vmul.f32 %v905, %v910
    %v912 = vmul.f32 %v906, %v910
    %v913 = vlaneseq
    %v914 = vshrl.u32 %v913, 7
    %v915 = vsub.s32 3, %v914
    %v916 = vrot.slane %v42, %v915
    %v917 = vadd.f32 %v911, %v916
    %v918 = vadd.f32 %v912, %v916
    %v919 = vpack.c.bf16 %v918, %v917
    %v920 = vlaneseq
    %v921 = vshrl.u32 %v920, 7
    %v922 = vsub.s32 6, %v921
    %v923 = vrot.slane %v42, %v922
    %v928 = vunpack.c.l.b16 %v30
    %v929 = vunpack.c.h.b16 %v30
    %v930 = vunpack.c.l.b16 %v31
    %v931 = vunpack.c.h.b16 %v31
    %v932 = vunpack.c.l.b16 %v32
    %v933 = vunpack.c.h.b16 %v32
    %v934 = vunpack.c.l.b16 %v33
    %v935 = vunpack.c.h.b16 %v33
    %v936 = vpack.c.b16 %v930, %v928
    %v937 = vpack.c.b16 %v931, %v929
    %v938 = vpack.c.b16 %v934, %v932
    %v939 = vpack.c.b16 %v935, %v933
    %940 = vrot.lane.b32.xlu0 %v936, 32
    %v941 = vpop.permute.xlu0 %940
    %942 = vrot.lane.b32.xlu0 %v937, 32
    %v943 = vpop.permute.xlu0 %942
    %944 = vrot.lane.b32.xlu0 %v938, 32
    %v945 = vpop.permute.xlu0 %944
    %946 = vrot.lane.b32.xlu0 %v939, 32
    %v947 = vpop.permute.xlu0 %946
    %vm948 = vcmask 261120
    %v949 = vsel %vm948, %v941, %v943
    %v950 = vsel %vm948, %v945, %v947
    %v954 = vsel %vm43, %v919, 0
    %956 = vmatprep.subr.bf16.mxu0 0
    %957 = vmatpush1.bf16.msra.mxu0 %v949
    %958 = vmatprep.subr.bf16.mxu0 0
    %959 = vmatpush1.bf16.msra.mxu0 %v950
    %960 = vmatprep.subr.bf16.mxu0 0
    %961 = vmatpush1.bf16.msra.mxu0 0
    %962 = vmatprep.subr.bf16.mxu0 0
    %963 = vmatpush1.bf16.msra.mxu0 0
    %964 = vmatprep.subr.bf16.mxu0 0
    %965 = vmatpush1.bf16.msra.mxu0 0
    %966 = vmatprep.subr.bf16.mxu0 0
    %967 = vmatpush1.bf16.msra.mxu0 0
    %968 = vmatprep.subr.bf16.mxu0 0
    %969 = vmatpush1.bf16.msra.mxu0 0
    %970 = vmatprep.subr.bf16.mxu0 0
    %971 = vmatpush1.bf16.msra.mxu0 0
    %972 = vmatprep.subr.bf16.mxu0 0
    %973 = vmatpush1.bf16.msra.mxu0 0
    %974 = vmatprep.subr.bf16.mxu0 0
    %975 = vmatpush1.bf16.msra.mxu0 0
    %976 = vmatprep.subr.bf16.mxu0 0
    %977 = vmatpush1.bf16.msra.mxu0 0
    %978 = vmatprep.subr.bf16.mxu0 0
    %979 = vmatpush1.bf16.msra.mxu0 0
    %980 = vmatprep.subr.bf16.mxu0 0
    %981 = vmatpush1.bf16.msra.mxu0 0
    %982 = vmatprep.subr.bf16.mxu0 0
    %983 = vmatpush1.bf16.msra.mxu0 0
    %984 = vmatprep.subr.bf16.mxu0 0
    %985 = vmatpush1.bf16.msra.mxu0 0
    %986 = vmatprep.subr.bf16.mxu0 0
    %987 = vmatpush1.bf16.msra.mxu0 0
    %988 = vmatprep.mubr.bf16.mxu0 0
    %989 = vmatmul.mubr.bf16.gmra.mrb[0].mxu0 %v954
    %v990 = vpop.f32.mrb[0].mxu0
    %v991 = vadd.f32 %v923, %v990
    %v992 = vpop.f32.mrb[0].mxu0
    %v993 = vpop.f32.mrb[0].mxu0
    %v994 = vadd.f32 %v923, %v993
    %v995 = vpop.f32.mrb[0].mxu0
    %996 = vdwg.mxu0
    %v997 = vmul.f32 %v991, 1.702
    %v998 = vmul.f32 %v994, 1.702
    %v999 = vxor.u32 %v997, 2147483648
    %v1000 = vxor.u32 %v998, 2147483648
    %v1001 = vmul.f32 %v999, 1.442695
    %v1002 = vpow.pop %v1001
    %v1003 = vmul.f32 %v1000, 1.442695
    %v1004 = vpow.pop %v1003
    %v1005 = vadd.f32 %v1002, 1.0
    %v1006 = vadd.f32 %v1004, 1.0
    %v1007 = vrcp.pop %v1005
    %v1008 = vmul.f32 1.0, %v1007
    %v1009 = vrcp.pop %v1006
    %v1010 = vmul.f32 1.0, %v1009
    %v1011 = vmul.f32 %v991, %v1008
    %v1012 = vmul.f32 %v994, %v1010
    %v1013 = vpack.c.bf16 %v1012, %v1011
    %v1014 = vlaneseq
    %v1015 = vshrl.u32 %v1014, 7
    %v1016 = vsub.s32 7, %v1015
    %v1017 = vrot.slane %v42, %v1016
    %v1022 = vunpack.c.l.b16 %v34
    %v1023 = vunpack.c.l.b16 %v35
    %v1024 = vunpack.c.l.b16 %v36
    %v1025 = vunpack.c.l.b16 %v37
    %v1026 = vpack.c.b16 %v1023, %v1022
    %v1027 = vpack.c.b16 %v1025, %v1024
    %1028 = vrot.lane.b32.xlu0 %v1026, 96
    %v1029 = vpop.permute.xlu0 %1028
    %1030 = vrot.lane.b32.xlu0 %v1027, 96
    %v1031 = vpop.permute.xlu0 %1030
    %vm1032 = vcmask 523264
    %v1034 = vsel %vm1032, %v1013, 0
    %v1037 = vsel %vm1032, %v1029, 0
    %v1040 = vsel %vm1032, %v1031, 0
    %1042 = vmatprep.subr.bf16.mxu0 0
    %1043 = vmatpush1.bf16.xpose.msra.mxu0 %v1037
    %1044 = vmatprep.subr.bf16.mxu0 0
    %1045 = vmatpush1.bf16.xpose.msra.mxu0 %v1040
    %1046 = vmatprep.subr.bf16.mxu0 0
    %1047 = vmatpush1.bf16.xpose.msra.mxu0 0
    %1048 = vmatprep.subr.bf16.mxu0 0
    %1049 = vmatpush1.bf16.xpose.msra.mxu0 0
    %1050 = vmatprep.subr.bf16.mxu0 0
    %1051 = vmatpush1.bf16.xpose.msra.mxu0 0
    %1052 = vmatprep.subr.bf16.mxu0 0
    %1053 = vmatpush1.bf16.xpose.msra.mxu0 0
    %1054 = vmatprep.subr.bf16.mxu0 0
    %1055 = vmatpush1.bf16.xpose.msra.mxu0 0
    %1056 = vmatprep.subr.bf16.mxu0 0
    %1057 = vmatpush1.bf16.xpose.msra.mxu0 0
    %1058 = vmatprep.subr.bf16.mxu0 0
    %1059 = vmatpush1.bf16.xpose.msra.mxu0 0
    %1060 = vmatprep.subr.bf16.mxu0 0
    %1061 = vmatpush1.bf16.xpose.msra.mxu0 0
    %1062 = vmatprep.subr.bf16.mxu0 0
    %1063 = vmatpush1.bf16.xpose.msra.mxu0 0
    %1064 = vmatprep.subr.bf16.mxu0 0
    %1065 = vmatpush1.bf16.xpose.msra.mxu0 0
    %1066 = vmatprep.subr.bf16.mxu0 0
    %1067 = vmatpush1.bf16.xpose.msra.mxu0 0
    %1068 = vmatprep.subr.bf16.mxu0 0
    %1069 = vmatpush1.bf16.xpose.msra.mxu0 0
    %1070 = vmatprep.subr.bf16.mxu0 0
    %1071 = vmatpush1.bf16.xpose.msra.mxu0 0
    %1072 = vmatprep.subr.bf16.mxu0 0
    %1073 = vmatpush1.bf16.xpose.msra.mxu0 0
    %1074 = vmatprep.mubr.bf16.mxu0 0
    %1075 = vmatmul.mubr.bf16.gmra.mrb[0].mxu0 %v1034
    %v1076 = vpop.f32.mrb[0].mxu0
    %v1077 = vadd.f32 %v1017, %v1076
    %v1078 = vpop.f32.mrb[0].mxu0
    %v1079 = vpop.f32.mrb[0].mxu0
    %v1080 = vadd.f32 %v1017, %v1079
    %v1081 = vpop.f32.mrb[0].mxu0
    %1082 = vdwg.mxu0
    %v1083 = vadd.f32 %v879, %v1077
    %v1084 = vadd.f32 %v880, %v1080
    %s1085 = scalar_lea.vmem %s2, 32
    %v1086 = vld [vmem:[%s1085] sm:$0xf]
    %v1087 = vld [vmem:[%s1085 + $0x8] sm:$0xf]
    %v1088 = vld [vmem:[%s1085 + $0x10] sm:$0xf]
    %v1089 = vld [vmem:[%s1085 + $0x18] sm:$0xf]
    %v1090 = vld [vmem:[%s1085] sm:$0xff]
    %v1091 = vld [vmem:[%s1085 + $0x8] sm:$0xff]
    %v1092 = vld [vmem:[%s1085 + $0x10] sm:$0xff]
    %v1093 = vld [vmem:[%s1085 + $0x18] sm:$0xff]
    %v1094 = vld [vmem:[%s1085 + $0x4] sm:$0xf]
    %v1095 = vld [vmem:[%s1085 + $0xc] sm:$0xf]
    %v1096 = vld [vmem:[%s1085 + $0x14] sm:$0xf]
    %v1097 = vld [vmem:[%s1085 + $0x1c] sm:$0xf]
    %s1098 = scalar_lea.vmem %s3, 16
    %v1099 = vld [vmem:[%s1098] sm:$0xf]
    %v1100 = vld [vmem:[%s1098 + $0x4] sm:$0xf]
    %v1101 = vld [vmem:[%s1098 + $0x8] sm:$0xf]
    %v1102 = vld [vmem:[%s1098 + $0xc] sm:$0xf]
    %s1103 = scalar_lea.vmem %s4, 8
    %v1104 = vld [vmem:[%s1103] sm:$0xff]
    %v1105 = vsel %vm43, %v1083, 0.0
    %1106 = vadd.xlane.f32.xlu0 %v1105
    %v1107 = vpop.xlane.xlu0 %1106
    %v1108 = vsel %vm43, %v1084, 0.0
    %1109 = vadd.xlane.f32.xlu0 %v1108
    %v1110 = vpop.xlane.xlu0 %1109
    %v1111 = vmul.f32 %v1107, %v50
    %v1112 = vmul.f32 %v1110, %v50
    %v1113 = vsub.f32 %v1083, %v1111
    %v1114 = vsub.f32 %v1084, %v1112
    %v1115 = vmul.f32 %v1113, %v1113
    %v1116 = vmul.f32 %v1114, %v1114
    %v1117 = vsel %vm43, %v1115, 0.0
    %1118 = vadd.xlane.f32.xlu0 %v1117
    %v1119 = vpop.xlane.xlu0 %1118
    %v1120 = vsel %vm43, %v1116, 0.0
    %1121 = vadd.xlane.f32.xlu0 %v1120
    %v1122 = vpop.xlane.xlu0 %1121
    %v1123 = vmul.f32 %v1119, %v50
    %v1124 = vmul.f32 %v1122, %v50
    %v1125 = vadd.f32 %v1123, 1e-05
    %v1126 = vadd.f32 %v1124, 1e-05
    %v1127 = vrsqrt.pop %v1125
    %v1128 = vrsqrt.pop %v1126
    %v1129 = vmul.f32 %v1113, %v1127
    %v1130 = vmul.f32 %v1114, %v1128
    %v1131 = vlaneseq
    %v1132 = vshrl.u32 %v1131, 7
    %v1133 = vsub.s32 0, %v1132
    %v1134 = vrot.slane %v1104, %v1133
    %v1135 = vmul.f32 %v1129, %v1134
    %v1136 = vmul.f32 %v1130, %v1134
    %v1137 = vlaneseq
    %v1138 = vshrl.u32 %v1137, 7
    %v1139 = vsub.s32 1, %v1138
    %v1140 = vrot.slane %v1104, %v1139
    %v1141 = vadd.f32 %v1135, %v1140
    %v1142 = vadd.f32 %v1136, %v1140
    %v1143 = vpack.c.bf16 %v1142, %v1141
    %v1144 = vlaneseq
    %v1145 = vshrl.u32 %v1144, 7
    %v1146 = vsub.s32 4, %v1145
    %v1147 = vrot.slane %v1104, %v1146
    %v1152 = vunpack.c.l.b16 %v1086
    %v1153 = vunpack.c.l.b16 %v1087
    %v1154 = vunpack.c.l.b16 %v1088
    %v1155 = vunpack.c.l.b16 %v1089
    %v1156 = vpack.c.b16 %v1153, %v1152
    %v1157 = vpack.c.b16 %v1155, %v1154
    %v1161 = vsel %vm43, %v1143, 0
    %1163 = vmatprep.subr.bf16.mxu0 0
    %1164 = vmatpush1.bf16.msra.mxu0 %v1156
    %1165 = vmatprep.subr.bf16.mxu0 0
    %1166 = vmatpush1.bf16.msra.mxu0 %v1157
    %1167 = vmatprep.subr.bf16.mxu0 0
    %1168 = vmatpush1.bf16.msra.mxu0 0
    %1169 = vmatprep.subr.bf16.mxu0 0
    %1170 = vmatpush1.bf16.msra.mxu0 0
    %1171 = vmatprep.subr.bf16.mxu0 0
    %1172 = vmatpush1.bf16.msra.mxu0 0
    %1173 = vmatprep.subr.bf16.mxu0 0
    %1174 = vmatpush1.bf16.msra.mxu0 0
    %1175 = vmatprep.subr.bf16.mxu0 0
    %1176 = vmatpush1.bf16.msra.mxu0 0
    %1177 = vmatprep.subr.bf16.mxu0 0
    %1178 = vmatpush1.bf16.msra.mxu0 0
    %1179 = vmatprep.subr.bf16.mxu0 0
    %1180 = vmatpush1.bf16.msra.mxu0 0
    %1181 = vmatprep.subr.bf16.mxu0 0
    %1182 = vmatpush1.bf16.msra.mxu0 0
    %1183 = vmatprep.subr.bf16.mxu0 0
    %1184 = vmatpush1.bf16.msra.mxu0 0
    %1185 = vmatprep.subr.bf16.mxu0 0
    %1186 = vmatpush1.bf16.msra.mxu0 0
    %1187 = vmatprep.subr.bf16.mxu0 0
    %1188 = vmatpush1.bf16.msra.mxu0 0
    %1189 = vmatprep.subr.bf16.mxu0 0
    %1190 = vmatpush1.bf16.msra.mxu0 0
    %1191 = vmatprep.subr.bf16.mxu0 0
    %1192 = vmatpush1.bf16.msra.mxu0 0
    %1193 = vmatprep.subr.bf16.mxu0 0
    %1194 = vmatpush1.bf16.msra.mxu0 0
    %1195 = vmatprep.mubr.bf16.mxu0 0
    %1196 = vmatmul.mubr.bf16.gmra.mrb[0].mxu0 %v1161
    %v1197 = vpop.f32.mrb[0].mxu0
    %v1198 = vadd.f32 %v1147, %v1197
    %v1199 = vpop.f32.mrb[0].mxu0
    %v1200 = vpop.f32.mrb[0].mxu0
    %v1201 = vadd.f32 %v1147, %v1200
    %v1202 = vpop.f32.mrb[0].mxu0
    %1203 = vdwg.mxu0
    %1206 = vrot.lane.b32.xlu0 %v1198, 120
    %v1207 = vpop.permute.xlu0 %1206
    %1208 = vrot.lane.b32.xlu0 %v1201, 120
    %v1209 = vpop.permute.xlu0 %1208
    %1212 = vrot.lane.b32.xlu0 %v1198, 112
    %v1213 = vpop.permute.xlu0 %1212
    %1214 = vrot.lane.b32.xlu0 %v1201, 112
    %v1215 = vpop.permute.xlu0 %1214
    %1218 = vrot.lane.b32.xlu0 %v1198, 104
    %v1219 = vpop.permute.xlu0 %1218
    %1220 = vrot.lane.b32.xlu0 %v1201, 104
    %v1221 = vpop.permute.xlu0 %1220
    %v1224 = vpack.c.bf16 %v1201, %v1198
    %v1225 = vpack.c.bf16 %v1209, %v1207
    %v1226 = vpack.c.bf16 %v1215, %v1213
    %v1227 = vpack.c.bf16 %v1221, %v1219
    %1229 = vrot.lane.b32.xlu0 %v1224, 96
    %v1230 = vpop.permute.xlu0 %1229
    %v1232 = vsel %vm171, %v1224, 0
    %v1235 = vsel %vm171, %v1230, 0
    %1237 = vmatprep.subr.bf16.mxu0 0
    %1238 = vmatpush1.bf16.xpose.msra.mxu0 %v1235
    %1239 = vmatprep.subr.bf16.mxu0 0
    %1240 = vmatpush1.bf16.xpose.msra.mxu0 0
    %1241 = vmatprep.subr.bf16.mxu0 0
    %1242 = vmatpush1.bf16.xpose.msra.mxu0 0
    %1243 = vmatprep.subr.bf16.mxu0 0
    %1244 = vmatpush1.bf16.xpose.msra.mxu0 0
    %1245 = vmatprep.subr.bf16.mxu0 0
    %1246 = vmatpush1.bf16.xpose.msra.mxu0 0
    %1247 = vmatprep.subr.bf16.mxu0 0
    %1248 = vmatpush1.bf16.xpose.msra.mxu0 0
    %1249 = vmatprep.subr.bf16.mxu0 0
    %1250 = vmatpush1.bf16.xpose.msra.mxu0 0
    %1251 = vmatprep.subr.bf16.mxu0 0
    %1252 = vmatpush1.bf16.xpose.msra.mxu0 0
    %1253 = vmatprep.subr.bf16.mxu0 0
    %1254 = vmatpush1.bf16.xpose.msra.mxu0 0
    %1255 = vmatprep.subr.bf16.mxu0 0
    %1256 = vmatpush1.bf16.xpose.msra.mxu0 0
    %1257 = vmatprep.subr.bf16.mxu0 0
    %1258 = vmatpush1.bf16.xpose.msra.mxu0 0
    %1259 = vmatprep.subr.bf16.mxu0 0
    %1260 = vmatpush1.bf16.xpose.msra.mxu0 0
    %1261 = vmatprep.subr.bf16.mxu0 0
    %1262 = vmatpush1.bf16.xpose.msra.mxu0 0
    %1263 = vmatprep.subr.bf16.mxu0 0
    %1264 = vmatpush1.bf16.xpose.msra.mxu0 0
    %1265 = vmatprep.subr.bf16.mxu0 0
    %1266 = vmatpush1.bf16.xpose.msra.mxu0 0
    %1267 = vmatprep.subr.bf16.mxu0 0
    %1268 = vmatpush1.bf16.xpose.msra.mxu0 0
    %1269 = vmatprep.mubr.bf16.mxu0 0
    %1270 = vmatmul.mubr.bf16.gmra.mrb[0].mxu0 %v1232
    %v1271 = vpop.f32.mrb[0].mxu0
    %v1272 = vadd.f32 0.0, %v1271
    %v1273 = vpop.f32.mrb[0].mxu0
    %v1274 = vpop.f32.mrb[0].mxu0
    %v1275 = vadd.f32 0.0, %v1274
    %v1276 = vpop.f32.mrb[0].mxu0
    %1277 = vdwg.mxu0
    %1279 = vrot.lane.b32.xlu0 %v1225, 96
    %v1280 = vpop.permute.xlu0 %1279
    %v1282 = vsel %vm171, %v1225, 0
    %v1285 = vsel %vm171, %v1280, 0
    %1287 = vmatprep.subr.bf16.mxu0 0
    %1288 = vmatpush1.bf16.xpose.msra.mxu0 %v1285
    %1289 = vmatprep.subr.bf16.mxu0 0
    %1290 = vmatpush1.bf16.xpose.msra.mxu0 0
    %1291 = vmatprep.subr.bf16.mxu0 0
    %1292 = vmatpush1.bf16.xpose.msra.mxu0 0
    %1293 = vmatprep.subr.bf16.mxu0 0
    %1294 = vmatpush1.bf16.xpose.msra.mxu0 0
    %1295 = vmatprep.subr.bf16.mxu0 0
    %1296 = vmatpush1.bf16.xpose.msra.mxu0 0
    %1297 = vmatprep.subr.bf16.mxu0 0
    %1298 = vmatpush1.bf16.xpose.msra.mxu0 0
    %1299 = vmatprep.subr.bf16.mxu0 0
    %1300 = vmatpush1.bf16.xpose.msra.mxu0 0
    %1301 = vmatprep.subr.bf16.mxu0 0
    %1302 = vmatpush1.bf16.xpose.msra.mxu0 0
    %1303 = vmatprep.subr.bf16.mxu0 0
    %1304 = vmatpush1.bf16.xpose.msra.mxu0 0
    %1305 = vmatprep.subr.bf16.mxu0 0
    %1306 = vmatpush1.bf16.xpose.msra.mxu0 0
    %1307 = vmatprep.subr.bf16.mxu0 0
    %1308 = vmatpush1.bf16.xpose.msra.mxu0 0
    %1309 = vmatprep.subr.bf16.mxu0 0
    %1310 = vmatpush1.bf16.xpose.msra.mxu0 0
    %1311 = vmatprep.subr.bf16.mxu0 0
    %1312 = vmatpush1.bf16.xpose.msra.mxu0 0
    %1313 = vmatprep.subr.bf16.mxu0 0
    %1314 = vmatpush1.bf16.xpose.msra.mxu0 0
    %1315 = vmatprep.subr.bf16.mxu0 0
    %1316 = vmatpush1.bf16.xpose.msra.mxu0 0
    %1317 = vmatprep.subr.bf16.mxu0 0
    %1318 = vmatpush1.bf16.xpose.msra.mxu0 0
    %1319 = vmatprep.mubr.bf16.mxu0 0
    %1320 = vmatmul.mubr.bf16.gmra.mrb[0].mxu0 %v1282
    %v1321 = vpop.f32.mrb[0].mxu0
    %v1322 = vadd.f32 0.0, %v1321
    %v1323 = vpop.f32.mrb[0].mxu0
    %v1324 = vpop.f32.mrb[0].mxu0
    %v1325 = vadd.f32 0.0, %v1324
    %v1326 = vpop.f32.mrb[0].mxu0
    %1327 = vdwg.mxu0
    %1329 = vrot.lane.b32.xlu0 %v1226, 96
    %v1330 = vpop.permute.xlu0 %1329
    %v1332 = vsel %vm171, %v1226, 0
    %v1335 = vsel %vm171, %v1330, 0
    %1337 = vmatprep.subr.bf16.mxu0 0
    %1338 = vmatpush1.bf16.xpose.msra.mxu0 %v1335
    %1339 = vmatprep.subr.bf16.mxu0 0
    %1340 = vmatpush1.bf16.xpose.msra.mxu0 0
    %1341 = vmatprep.subr.bf16.mxu0 0
    %1342 = vmatpush1.bf16.xpose.msra.mxu0 0
    %1343 = vmatprep.subr.bf16.mxu0 0
    %1344 = vmatpush1.bf16.xpose.msra.mxu0 0
    %1345 = vmatprep.subr.bf16.mxu0 0
    %1346 = vmatpush1.bf16.xpose.msra.mxu0 0
    %1347 = vmatprep.subr.bf16.mxu0 0
    %1348 = vmatpush1.bf16.xpose.msra.mxu0 0
    %1349 = vmatprep.subr.bf16.mxu0 0
    %1350 = vmatpush1.bf16.xpose.msra.mxu0 0
    %1351 = vmatprep.subr.bf16.mxu0 0
    %1352 = vmatpush1.bf16.xpose.msra.mxu0 0
    %1353 = vmatprep.subr.bf16.mxu0 0
    %1354 = vmatpush1.bf16.xpose.msra.mxu0 0
    %1355 = vmatprep.subr.bf16.mxu0 0
    %1356 = vmatpush1.bf16.xpose.msra.mxu0 0
    %1357 = vmatprep.subr.bf16.mxu0 0
    %1358 = vmatpush1.bf16.xpose.msra.mxu0 0
    %1359 = vmatprep.subr.bf16.mxu0 0
    %1360 = vmatpush1.bf16.xpose.msra.mxu0 0
    %1361 = vmatprep.subr.bf16.mxu0 0
    %1362 = vmatpush1.bf16.xpose.msra.mxu0 0
    %1363 = vmatprep.subr.bf16.mxu0 0
    %1364 = vmatpush1.bf16.xpose.msra.mxu0 0
    %1365 = vmatprep.subr.bf16.mxu0 0
    %1366 = vmatpush1.bf16.xpose.msra.mxu0 0
    %1367 = vmatprep.subr.bf16.mxu0 0
    %1368 = vmatpush1.bf16.xpose.msra.mxu0 0
    %1369 = vmatprep.mubr.bf16.mxu0 0
    %1370 = vmatmul.mubr.bf16.gmra.mrb[0].mxu0 %v1332
    %v1371 = vpop.f32.mrb[0].mxu0
    %v1372 = vadd.f32 0.0, %v1371
    %v1373 = vpop.f32.mrb[0].mxu0
    %v1374 = vpop.f32.mrb[0].mxu0
    %v1375 = vadd.f32 0.0, %v1374
    %v1376 = vpop.f32.mrb[0].mxu0
    %1377 = vdwg.mxu0
    %1379 = vrot.lane.b32.xlu0 %v1227, 96
    %v1380 = vpop.permute.xlu0 %1379
    %v1382 = vsel %vm171, %v1227, 0
    %v1385 = vsel %vm171, %v1380, 0
    %1387 = vmatprep.subr.bf16.mxu0 0
    %1388 = vmatpush1.bf16.xpose.msra.mxu0 %v1385
    %1389 = vmatprep.subr.bf16.mxu0 0
    %1390 = vmatpush1.bf16.xpose.msra.mxu0 0
    %1391 = vmatprep.subr.bf16.mxu0 0
    %1392 = vmatpush1.bf16.xpose.msra.mxu0 0
    %1393 = vmatprep.subr.bf16.mxu0 0
    %1394 = vmatpush1.bf16.xpose.msra.mxu0 0
    %1395 = vmatprep.subr.bf16.mxu0 0
    %1396 = vmatpush1.bf16.xpose.msra.mxu0 0
    %1397 = vmatprep.subr.bf16.mxu0 0
    %1398 = vmatpush1.bf16.xpose.msra.mxu0 0
    %1399 = vmatprep.subr.bf16.mxu0 0
    %1400 = vmatpush1.bf16.xpose.msra.mxu0 0
    %1401 = vmatprep.subr.bf16.mxu0 0
    %1402 = vmatpush1.bf16.xpose.msra.mxu0 0
    %1403 = vmatprep.subr.bf16.mxu0 0
    %1404 = vmatpush1.bf16.xpose.msra.mxu0 0
    %1405 = vmatprep.subr.bf16.mxu0 0
    %1406 = vmatpush1.bf16.xpose.msra.mxu0 0
    %1407 = vmatprep.subr.bf16.mxu0 0
    %1408 = vmatpush1.bf16.xpose.msra.mxu0 0
    %1409 = vmatprep.subr.bf16.mxu0 0
    %1410 = vmatpush1.bf16.xpose.msra.mxu0 0
    %1411 = vmatprep.subr.bf16.mxu0 0
    %1412 = vmatpush1.bf16.xpose.msra.mxu0 0
    %1413 = vmatprep.subr.bf16.mxu0 0
    %1414 = vmatpush1.bf16.xpose.msra.mxu0 0
    %1415 = vmatprep.subr.bf16.mxu0 0
    %1416 = vmatpush1.bf16.xpose.msra.mxu0 0
    %1417 = vmatprep.subr.bf16.mxu0 0
    %1418 = vmatpush1.bf16.xpose.msra.mxu0 0
    %1419 = vmatprep.mubr.bf16.mxu0 0
    %1420 = vmatmul.mubr.bf16.gmra.mrb[0].mxu0 %v1382
    %v1421 = vpop.f32.mrb[0].mxu0
    %v1422 = vadd.f32 0.0, %v1421
    %v1423 = vpop.f32.mrb[0].mxu0
    %v1424 = vpop.f32.mrb[0].mxu0
    %v1425 = vadd.f32 0.0, %v1424
    %v1426 = vpop.f32.mrb[0].mxu0
    %1427 = vdwg.mxu0
    %v1428 = vmul.f32 %v1272, 0.35355338
    %v1429 = vmul.f32 %v1275, 0.35355338
    %v1430 = vmul.f32 %v1322, 0.35355338
    %v1431 = vmul.f32 %v1325, 0.35355338
    %v1432 = vmul.f32 %v1372, 0.35355338
    %v1433 = vmul.f32 %v1375, 0.35355338
    %v1434 = vmul.f32 %v1422, 0.35355338
    %v1435 = vmul.f32 %v1425, 0.35355338
    %v1436 = vadd.f32 %v1428, %v24
    %v1437 = vadd.f32 %v1429, %v25
    %v1438 = vadd.f32 %v1430, %v24
    %v1439 = vadd.f32 %v1431, %v25
    %v1440 = vadd.f32 %v1432, %v24
    %v1441 = vadd.f32 %v1433, %v25
    %v1442 = vadd.f32 %v1434, %v24
    %v1443 = vadd.f32 %v1435, %v25
    %v1444 = vsel %vm385, %v1436, -inf
    %1445 = vmax.xlane.f32.xlu0 %v1444
    %v1446 = vpop.xlane.xlu0 %1445
    %v1447 = vsel %vm385, %v1437, -inf
    %1448 = vmax.xlane.f32.xlu0 %v1447
    %v1449 = vpop.xlane.xlu0 %1448
    %v1450 = vsel %vm385, %v1438, -inf
    %1451 = vmax.xlane.f32.xlu0 %v1450
    %v1452 = vpop.xlane.xlu0 %1451
    %v1453 = vsel %vm385, %v1439, -inf
    %1454 = vmax.xlane.f32.xlu0 %v1453
    %v1455 = vpop.xlane.xlu0 %1454
    %v1456 = vsel %vm385, %v1440, -inf
    %1457 = vmax.xlane.f32.xlu0 %v1456
    %v1458 = vpop.xlane.xlu0 %1457
    %v1459 = vsel %vm385, %v1441, -inf
    %1460 = vmax.xlane.f32.xlu0 %v1459
    %v1461 = vpop.xlane.xlu0 %1460
    %v1462 = vsel %vm385, %v1442, -inf
    %1463 = vmax.xlane.f32.xlu0 %v1462
    %v1464 = vpop.xlane.xlu0 %1463
    %v1465 = vsel %vm385, %v1443, -inf
    %1466 = vmax.xlane.f32.xlu0 %v1465
    %v1467 = vpop.xlane.xlu0 %1466
    %v1468 = vsub.f32 %v1436, %v1446
    %v1469 = vsub.f32 %v1437, %v1449
    %v1470 = vsub.f32 %v1438, %v1452
    %v1471 = vsub.f32 %v1439, %v1455
    %v1472 = vsub.f32 %v1440, %v1458
    %v1473 = vsub.f32 %v1441, %v1461
    %v1474 = vsub.f32 %v1442, %v1464
    %v1475 = vsub.f32 %v1443, %v1467
    %v1476 = vmul.f32 %v1468, 1.442695
    %v1477 = vpow.pop %v1476
    %v1478 = vmul.f32 %v1469, 1.442695
    %v1479 = vpow.pop %v1478
    %v1480 = vmul.f32 %v1470, 1.442695
    %v1481 = vpow.pop %v1480
    %v1482 = vmul.f32 %v1471, 1.442695
    %v1483 = vpow.pop %v1482
    %v1484 = vmul.f32 %v1472, 1.442695
    %v1485 = vpow.pop %v1484
    %v1486 = vmul.f32 %v1473, 1.442695
    %v1487 = vpow.pop %v1486
    %v1488 = vmul.f32 %v1474, 1.442695
    %v1489 = vpow.pop %v1488
    %v1490 = vmul.f32 %v1475, 1.442695
    %v1491 = vpow.pop %v1490
    %v1492 = vsel %vm385, %v1477, 0.0
    %1493 = vadd.xlane.f32.xlu0 %v1492
    %v1494 = vpop.xlane.xlu0 %1493
    %v1495 = vsel %vm385, %v1479, 0.0
    %1496 = vadd.xlane.f32.xlu0 %v1495
    %v1497 = vpop.xlane.xlu0 %1496
    %v1498 = vsel %vm385, %v1481, 0.0
    %1499 = vadd.xlane.f32.xlu0 %v1498
    %v1500 = vpop.xlane.xlu0 %1499
    %v1501 = vsel %vm385, %v1483, 0.0
    %1502 = vadd.xlane.f32.xlu0 %v1501
    %v1503 = vpop.xlane.xlu0 %1502
    %v1504 = vsel %vm385, %v1485, 0.0
    %1505 = vadd.xlane.f32.xlu0 %v1504
    %v1506 = vpop.xlane.xlu0 %1505
    %v1507 = vsel %vm385, %v1487, 0.0
    %1508 = vadd.xlane.f32.xlu0 %v1507
    %v1509 = vpop.xlane.xlu0 %1508
    %v1510 = vsel %vm385, %v1489, 0.0
    %1511 = vadd.xlane.f32.xlu0 %v1510
    %v1512 = vpop.xlane.xlu0 %1511
    %v1513 = vsel %vm385, %v1491, 0.0
    %1514 = vadd.xlane.f32.xlu0 %v1513
    %v1515 = vpop.xlane.xlu0 %1514
    %v1516 = vrcp.pop %v1494
    %v1517 = vmul.f32 %v1477, %v1516
    %v1518 = vrcp.pop %v1497
    %v1519 = vmul.f32 %v1479, %v1518
    %v1520 = vrcp.pop %v1500
    %v1521 = vmul.f32 %v1481, %v1520
    %v1522 = vrcp.pop %v1503
    %v1523 = vmul.f32 %v1483, %v1522
    %v1524 = vrcp.pop %v1506
    %v1525 = vmul.f32 %v1485, %v1524
    %v1526 = vrcp.pop %v1509
    %v1527 = vmul.f32 %v1487, %v1526
    %v1528 = vrcp.pop %v1512
    %v1529 = vmul.f32 %v1489, %v1528
    %v1530 = vrcp.pop %v1515
    %v1531 = vmul.f32 %v1491, %v1530
    %v1532 = vpack.c.bf16 %v1519, %v1517
    %v1533 = vpack.c.bf16 %v1523, %v1521
    %v1534 = vpack.c.bf16 %v1527, %v1525
    %v1535 = vpack.c.bf16 %v1531, %v1529
    %1536 = vrot.lane.b32.xlu0 %v1224, 64
    %v1537 = vpop.permute.xlu0 %1536
    %v1540 = vsel %vm385, %v1532, 0
    %1542 = vmatprep.subr.bf16.mxu0 0
    %1543 = vmatpush1.bf16.msra.mxu0 %v1537
    %1544 = vmatprep.subr.bf16.mxu0 0
    %1545 = vmatpush1.bf16.msra.mxu0 0
    %1546 = vmatprep.subr.bf16.mxu0 0
    %1547 = vmatpush1.bf16.msra.mxu0 0
    %1548 = vmatprep.subr.bf16.mxu0 0
    %1549 = vmatpush1.bf16.msra.mxu0 0
    %1550 = vmatprep.subr.bf16.mxu0 0
    %1551 = vmatpush1.bf16.msra.mxu0 0
    %1552 = vmatprep.subr.bf16.mxu0 0
    %1553 = vmatpush1.bf16.msra.mxu0 0
    %1554 = vmatprep.subr.bf16.mxu0 0
    %1555 = vmatpush1.bf16.msra.mxu0 0
    %1556 = vmatprep.subr.bf16.mxu0 0
    %1557 = vmatpush1.bf16.msra.mxu0 0
    %1558 = vmatprep.subr.bf16.mxu0 0
    %1559 = vmatpush1.bf16.msra.mxu0 0
    %1560 = vmatprep.subr.bf16.mxu0 0
    %1561 = vmatpush1.bf16.msra.mxu0 0
    %1562 = vmatprep.subr.bf16.mxu0 0
    %1563 = vmatpush1.bf16.msra.mxu0 0
    %1564 = vmatprep.subr.bf16.mxu0 0
    %1565 = vmatpush1.bf16.msra.mxu0 0
    %1566 = vmatprep.subr.bf16.mxu0 0
    %1567 = vmatpush1.bf16.msra.mxu0 0
    %1568 = vmatprep.subr.bf16.mxu0 0
    %1569 = vmatpush1.bf16.msra.mxu0 0
    %1570 = vmatprep.subr.bf16.mxu0 0
    %1571 = vmatpush1.bf16.msra.mxu0 0
    %1572 = vmatprep.subr.bf16.mxu0 0
    %1573 = vmatpush1.bf16.msra.mxu0 0
    %1574 = vmatprep.mubr.bf16.mxu0 0
    %1575 = vmatmul.mubr.bf16.gmra.mrb[0].mxu0 %v1540
    %v1576 = vpop.f32.mrb[0].mxu0
    %v1577 = vadd.f32 0.0, %v1576
    %v1578 = vpop.f32.mrb[0].mxu0
    %v1579 = vpop.f32.mrb[0].mxu0
    %v1580 = vadd.f32 0.0, %v1579
    %v1581 = vpop.f32.mrb[0].mxu0
    %1582 = vdwg.mxu0
    %1583 = vrot.lane.b32.xlu0 %v1225, 64
    %v1584 = vpop.permute.xlu0 %1583
    %v1587 = vsel %vm385, %v1533, 0
    %1589 = vmatprep.subr.bf16.mxu0 0
    %1590 = vmatpush1.bf16.msra.mxu0 %v1584
    %1591 = vmatprep.subr.bf16.mxu0 0
    %1592 = vmatpush1.bf16.msra.mxu0 0
    %1593 = vmatprep.subr.bf16.mxu0 0
    %1594 = vmatpush1.bf16.msra.mxu0 0
    %1595 = vmatprep.subr.bf16.mxu0 0
    %1596 = vmatpush1.bf16.msra.mxu0 0
    %1597 = vmatprep.subr.bf16.mxu0 0
    %1598 = vmatpush1.bf16.msra.mxu0 0
    %1599 = vmatprep.subr.bf16.mxu0 0
    %1600 = vmatpush1.bf16.msra.mxu0 0
    %1601 = vmatprep.subr.bf16.mxu0 0
    %1602 = vmatpush1.bf16.msra.mxu0 0
    %1603 = vmatprep.subr.bf16.mxu0 0
    %1604 = vmatpush1.bf16.msra.mxu0 0
    %1605 = vmatprep.subr.bf16.mxu0 0
    %1606 = vmatpush1.bf16.msra.mxu0 0
    %1607 = vmatprep.subr.bf16.mxu0 0
    %1608 = vmatpush1.bf16.msra.mxu0 0
    %1609 = vmatprep.subr.bf16.mxu0 0
    %1610 = vmatpush1.bf16.msra.mxu0 0
    %1611 = vmatprep.subr.bf16.mxu0 0
    %1612 = vmatpush1.bf16.msra.mxu0 0
    %1613 = vmatprep.subr.bf16.mxu0 0
    %1614 = vmatpush1.bf16.msra.mxu0 0
    %1615 = vmatprep.subr.bf16.mxu0 0
    %1616 = vmatpush1.bf16.msra.mxu0 0
    %1617 = vmatprep.subr.bf16.mxu0 0
    %1618 = vmatpush1.bf16.msra.mxu0 0
    %1619 = vmatprep.subr.bf16.mxu0 0
    %1620 = vmatpush1.bf16.msra.mxu0 0
    %1621 = vmatprep.mubr.bf16.mxu0 0
    %1622 = vmatmul.mubr.bf16.gmra.mrb[0].mxu0 %v1587
    %v1623 = vpop.f32.mrb[0].mxu0
    %v1624 = vadd.f32 0.0, %v1623
    %v1625 = vpop.f32.mrb[0].mxu0
    %v1626 = vpop.f32.mrb[0].mxu0
    %v1627 = vadd.f32 0.0, %v1626
    %v1628 = vpop.f32.mrb[0].mxu0
    %1629 = vdwg.mxu0
    %1630 = vrot.lane.b32.xlu0 %v1226, 64
    %v1631 = vpop.permute.xlu0 %1630
    %v1634 = vsel %vm385, %v1534, 0
    %1636 = vmatprep.subr.bf16.mxu0 0
    %1637 = vmatpush1.bf16.msra.mxu0 %v1631
    %1638 = vmatprep.subr.bf16.mxu0 0
    %1639 = vmatpush1.bf16.msra.mxu0 0
    %1640 = vmatprep.subr.bf16.mxu0 0
    %1641 = vmatpush1.bf16.msra.mxu0 0
    %1642 = vmatprep.subr.bf16.mxu0 0
    %1643 = vmatpush1.bf16.msra.mxu0 0
    %1644 = vmatprep.subr.bf16.mxu0 0
    %1645 = vmatpush1.bf16.msra.mxu0 0
    %1646 = vmatprep.subr.bf16.mxu0 0
    %1647 = vmatpush1.bf16.msra.mxu0 0
    %1648 = vmatprep.subr.bf16.mxu0 0
    %1649 = vmatpush1.bf16.msra.mxu0 0
    %1650 = vmatprep.subr.bf16.mxu0 0
    %1651 = vmatpush1.bf16.msra.mxu0 0
    %1652 = vmatprep.subr.bf16.mxu0 0
    %1653 = vmatpush1.bf16.msra.mxu0 0
    %1654 = vmatprep.subr.bf16.mxu0 0
    %1655 = vmatpush1.bf16.msra.mxu0 0
    %1656 = vmatprep.subr.bf16.mxu0 0
    %1657 = vmatpush1.bf16.msra.mxu0 0
    %1658 = vmatprep.subr.bf16.mxu0 0
    %1659 = vmatpush1.bf16.msra.mxu0 0
    %1660 = vmatprep.subr.bf16.mxu0 0
    %1661 = vmatpush1.bf16.msra.mxu0 0
    %1662 = vmatprep.subr.bf16.mxu0 0
    %1663 = vmatpush1.bf16.msra.mxu0 0
    %1664 = vmatprep.subr.bf16.mxu0 0
    %1665 = vmatpush1.bf16.msra.mxu0 0
    %1666 = vmatprep.subr.bf16.mxu0 0
    %1667 = vmatpush1.bf16.msra.mxu0 0
    %1668 = vmatprep.mubr.bf16.mxu0 0
    %1669 = vmatmul.mubr.bf16.gmra.mrb[0].mxu0 %v1634
    %v1670 = vpop.f32.mrb[0].mxu0
    %v1671 = vadd.f32 0.0, %v1670
    %v1672 = vpop.f32.mrb[0].mxu0
    %v1673 = vpop.f32.mrb[0].mxu0
    %v1674 = vadd.f32 0.0, %v1673
    %v1675 = vpop.f32.mrb[0].mxu0
    %1676 = vdwg.mxu0
    %1677 = vrot.lane.b32.xlu0 %v1227, 64
    %v1678 = vpop.permute.xlu0 %1677
    %v1681 = vsel %vm385, %v1535, 0
    %1683 = vmatprep.subr.bf16.mxu0 0
    %1684 = vmatpush1.bf16.msra.mxu0 %v1678
    %1685 = vmatprep.subr.bf16.mxu0 0
    %1686 = vmatpush1.bf16.msra.mxu0 0
    %1687 = vmatprep.subr.bf16.mxu0 0
    %1688 = vmatpush1.bf16.msra.mxu0 0
    %1689 = vmatprep.subr.bf16.mxu0 0
    %1690 = vmatpush1.bf16.msra.mxu0 0
    %1691 = vmatprep.subr.bf16.mxu0 0
    %1692 = vmatpush1.bf16.msra.mxu0 0
    %1693 = vmatprep.subr.bf16.mxu0 0
    %1694 = vmatpush1.bf16.msra.mxu0 0
    %1695 = vmatprep.subr.bf16.mxu0 0
    %1696 = vmatpush1.bf16.msra.mxu0 0
    %1697 = vmatprep.subr.bf16.mxu0 0
    %1698 = vmatpush1.bf16.msra.mxu0 0
    %1699 = vmatprep.subr.bf16.mxu0 0
    %1700 = vmatpush1.bf16.msra.mxu0 0
    %1701 = vmatprep.subr.bf16.mxu0 0
    %1702 = vmatpush1.bf16.msra.mxu0 0
    %1703 = vmatprep.subr.bf16.mxu0 0
    %1704 = vmatpush1.bf16.msra.mxu0 0
    %1705 = vmatprep.subr.bf16.mxu0 0
    %1706 = vmatpush1.bf16.msra.mxu0 0
    %1707 = vmatprep.subr.bf16.mxu0 0
    %1708 = vmatpush1.bf16.msra.mxu0 0
    %1709 = vmatprep.subr.bf16.mxu0 0
    %1710 = vmatpush1.bf16.msra.mxu0 0
    %1711 = vmatprep.subr.bf16.mxu0 0
    %1712 = vmatpush1.bf16.msra.mxu0 0
    %1713 = vmatprep.subr.bf16.mxu0 0
    %1714 = vmatpush1.bf16.msra.mxu0 0
    %1715 = vmatprep.mubr.bf16.mxu0 0
    %1716 = vmatmul.mubr.bf16.gmra.mrb[0].mxu0 %v1681
    %v1717 = vpop.f32.mrb[0].mxu0
    %v1718 = vadd.f32 0.0, %v1717
    %v1719 = vpop.f32.mrb[0].mxu0
    %v1720 = vpop.f32.mrb[0].mxu0
    %v1721 = vadd.f32 0.0, %v1720
    %v1722 = vpop.f32.mrb[0].mxu0
    %1723 = vdwg.mxu0
    %v1724 = vpack.c.bf16 %v1580, %v1577
    %v1725 = vpack.c.bf16 %v1627, %v1624
    %v1726 = vpack.c.bf16 %v1674, %v1671
    %v1727 = vpack.c.bf16 %v1721, %v1718
    %v1729 = vsel %vm171, %v1724, 0
    %v1732 = vsel %vm673, %v1099, 0
    %1734 = vmatprep.subr.bf16.mxu0 0
    %1735 = vmatpush1.bf16.msra.mxu0 %v1732
    %1736 = vmatprep.subr.bf16.mxu0 0
    %1737 = vmatpush1.bf16.msra.mxu0 0
    %1738 = vmatprep.subr.bf16.mxu0 0
    %1739 = vmatpush1.bf16.msra.mxu0 0
    %1740 = vmatprep.subr.bf16.mxu0 0
    %1741 = vmatpush1.bf16.msra.mxu0 0
    %1742 = vmatprep.subr.bf16.mxu0 0
    %1743 = vmatpush1.bf16.msra.mxu0 0
    %1744 = vmatprep.subr.bf16.mxu0 0
    %1745 = vmatpush1.bf16.msra.mxu0 0
    %1746 = vmatprep.subr.bf16.mxu0 0
    %1747 = vmatpush1.bf16.msra.mxu0 0
    %1748 = vmatprep.subr.bf16.mxu0 0
    %1749 = vmatpush1.bf16.msra.mxu0 0
    %1750 = vmatprep.subr.bf16.mxu0 0
    %1751 = vmatpush1.bf16.msra.mxu0 0
    %1752 = vmatprep.subr.bf16.mxu0 0
    %1753 = vmatpush1.bf16.msra.mxu0 0
    %1754 = vmatprep.subr.bf16.mxu0 0
    %1755 = vmatpush1.bf16.msra.mxu0 0
    %1756 = vmatprep.subr.bf16.mxu0 0
    %1757 = vmatpush1.bf16.msra.mxu0 0
    %1758 = vmatprep.subr.bf16.mxu0 0
    %1759 = vmatpush1.bf16.msra.mxu0 0
    %1760 = vmatprep.subr.bf16.mxu0 0
    %1761 = vmatpush1.bf16.msra.mxu0 0
    %1762 = vmatprep.subr.bf16.mxu0 0
    %1763 = vmatpush1.bf16.msra.mxu0 0
    %1764 = vmatprep.subr.bf16.mxu0 0
    %1765 = vmatpush1.bf16.msra.mxu0 0
    %1766 = vmatprep.mubr.bf16.mxu0 0
    %1767 = vmatmul.mubr.bf16.gmra.mrb[0].mxu0 %v1729
    %v1768 = vpop.f32.mrb[0].mxu0
    %v1769 = vadd.f32 0.0, %v1768
    %v1770 = vpop.f32.mrb[0].mxu0
    %v1771 = vpop.f32.mrb[0].mxu0
    %v1772 = vadd.f32 0.0, %v1771
    %v1773 = vpop.f32.mrb[0].mxu0
    %1774 = vdwg.mxu0
    %v1776 = vsel %vm171, %v1725, 0
    %v1779 = vsel %vm673, %v1100, 0
    %1781 = vmatprep.subr.bf16.mxu0 0
    %1782 = vmatpush1.bf16.msra.mxu0 %v1779
    %1783 = vmatprep.subr.bf16.mxu0 0
    %1784 = vmatpush1.bf16.msra.mxu0 0
    %1785 = vmatprep.subr.bf16.mxu0 0
    %1786 = vmatpush1.bf16.msra.mxu0 0
    %1787 = vmatprep.subr.bf16.mxu0 0
    %1788 = vmatpush1.bf16.msra.mxu0 0
    %1789 = vmatprep.subr.bf16.mxu0 0
    %1790 = vmatpush1.bf16.msra.mxu0 0
    %1791 = vmatprep.subr.bf16.mxu0 0
    %1792 = vmatpush1.bf16.msra.mxu0 0
    %1793 = vmatprep.subr.bf16.mxu0 0
    %1794 = vmatpush1.bf16.msra.mxu0 0
    %1795 = vmatprep.subr.bf16.mxu0 0
    %1796 = vmatpush1.bf16.msra.mxu0 0
    %1797 = vmatprep.subr.bf16.mxu0 0
    %1798 = vmatpush1.bf16.msra.mxu0 0
    %1799 = vmatprep.subr.bf16.mxu0 0
    %1800 = vmatpush1.bf16.msra.mxu0 0
    %1801 = vmatprep.subr.bf16.mxu0 0
    %1802 = vmatpush1.bf16.msra.mxu0 0
    %1803 = vmatprep.subr.bf16.mxu0 0
    %1804 = vmatpush1.bf16.msra.mxu0 0
    %1805 = vmatprep.subr.bf16.mxu0 0
    %1806 = vmatpush1.bf16.msra.mxu0 0
    %1807 = vmatprep.subr.bf16.mxu0 0
    %1808 = vmatpush1.bf16.msra.mxu0 0
    %1809 = vmatprep.subr.bf16.mxu0 0
    %1810 = vmatpush1.bf16.msra.mxu0 0
    %1811 = vmatprep.subr.bf16.mxu0 0
    %1812 = vmatpush1.bf16.msra.mxu0 0
    %1813 = vmatprep.mubr.bf16.mxu0 0
    %1814 = vmatmul.mubr.bf16.gmra.mrb[0].mxu0 %v1776
    %v1815 = vpop.f32.mrb[0].mxu0
    %v1816 = vadd.f32 0.0, %v1815
    %v1817 = vpop.f32.mrb[0].mxu0
    %v1818 = vpop.f32.mrb[0].mxu0
    %v1819 = vadd.f32 0.0, %v1818
    %v1820 = vpop.f32.mrb[0].mxu0
    %1821 = vdwg.mxu0
    %v1823 = vsel %vm171, %v1726, 0
    %v1826 = vsel %vm673, %v1101, 0
    %1828 = vmatprep.subr.bf16.mxu0 0
    %1829 = vmatpush1.bf16.msra.mxu0 %v1826
    %1830 = vmatprep.subr.bf16.mxu0 0
    %1831 = vmatpush1.bf16.msra.mxu0 0
    %1832 = vmatprep.subr.bf16.mxu0 0
    %1833 = vmatpush1.bf16.msra.mxu0 0
    %1834 = vmatprep.subr.bf16.mxu0 0
    %1835 = vmatpush1.bf16.msra.mxu0 0
    %1836 = vmatprep.subr.bf16.mxu0 0
    %1837 = vmatpush1.bf16.msra.mxu0 0
    %1838 = vmatprep.subr.bf16.mxu0 0
    %1839 = vmatpush1.bf16.msra.mxu0 0
    %1840 = vmatprep.subr.bf16.mxu0 0
    %1841 = vmatpush1.bf16.msra.mxu0 0
    %1842 = vmatprep.subr.bf16.mxu0 0
    %1843 = vmatpush1.bf16.msra.mxu0 0
    %1844 = vmatprep.subr.bf16.mxu0 0
    %1845 = vmatpush1.bf16.msra.mxu0 0
    %1846 = vmatprep.subr.bf16.mxu0 0
    %1847 = vmatpush1.bf16.msra.mxu0 0
    %1848 = vmatprep.subr.bf16.mxu0 0
    %1849 = vmatpush1.bf16.msra.mxu0 0
    %1850 = vmatprep.subr.bf16.mxu0 0
    %1851 = vmatpush1.bf16.msra.mxu0 0
    %1852 = vmatprep.subr.bf16.mxu0 0
    %1853 = vmatpush1.bf16.msra.mxu0 0
    %1854 = vmatprep.subr.bf16.mxu0 0
    %1855 = vmatpush1.bf16.msra.mxu0 0
    %1856 = vmatprep.subr.bf16.mxu0 0
    %1857 = vmatpush1.bf16.msra.mxu0 0
    %1858 = vmatprep.subr.bf16.mxu0 0
    %1859 = vmatpush1.bf16.msra.mxu0 0
    %1860 = vmatprep.mubr.bf16.mxu0 0
    %1861 = vmatmul.mubr.bf16.gmra.mrb[0].mxu0 %v1823
    %v1862 = vpop.f32.mrb[0].mxu0
    %v1863 = vadd.f32 0.0, %v1862
    %v1864 = vpop.f32.mrb[0].mxu0
    %v1865 = vpop.f32.mrb[0].mxu0
    %v1866 = vadd.f32 0.0, %v1865
    %v1867 = vpop.f32.mrb[0].mxu0
    %1868 = vdwg.mxu0
    %v1870 = vsel %vm171, %v1727, 0
    %v1873 = vsel %vm673, %v1102, 0
    %1875 = vmatprep.subr.bf16.mxu0 0
    %1876 = vmatpush1.bf16.msra.mxu0 %v1873
    %1877 = vmatprep.subr.bf16.mxu0 0
    %1878 = vmatpush1.bf16.msra.mxu0 0
    %1879 = vmatprep.subr.bf16.mxu0 0
    %1880 = vmatpush1.bf16.msra.mxu0 0
    %1881 = vmatprep.subr.bf16.mxu0 0
    %1882 = vmatpush1.bf16.msra.mxu0 0
    %1883 = vmatprep.subr.bf16.mxu0 0
    %1884 = vmatpush1.bf16.msra.mxu0 0
    %1885 = vmatprep.subr.bf16.mxu0 0
    %1886 = vmatpush1.bf16.msra.mxu0 0
    %1887 = vmatprep.subr.bf16.mxu0 0
    %1888 = vmatpush1.bf16.msra.mxu0 0
    %1889 = vmatprep.subr.bf16.mxu0 0
    %1890 = vmatpush1.bf16.msra.mxu0 0
    %1891 = vmatprep.subr.bf16.mxu0 0
    %1892 = vmatpush1.bf16.msra.mxu0 0
    %1893 = vmatprep.subr.bf16.mxu0 0
    %1894 = vmatpush1.bf16.msra.mxu0 0
    %1895 = vmatprep.subr.bf16.mxu0 0
    %1896 = vmatpush1.bf16.msra.mxu0 0
    %1897 = vmatprep.subr.bf16.mxu0 0
    %1898 = vmatpush1.bf16.msra.mxu0 0
    %1899 = vmatprep.subr.bf16.mxu0 0
    %1900 = vmatpush1.bf16.msra.mxu0 0
    %1901 = vmatprep.subr.bf16.mxu0 0
    %1902 = vmatpush1.bf16.msra.mxu0 0
    %1903 = vmatprep.subr.bf16.mxu0 0
    %1904 = vmatpush1.bf16.msra.mxu0 0
    %1905 = vmatprep.subr.bf16.mxu0 0
    %1906 = vmatpush1.bf16.msra.mxu0 0
    %1907 = vmatprep.mubr.bf16.mxu0 0
    %1908 = vmatmul.mubr.bf16.gmra.mrb[0].mxu0 %v1870
    %v1909 = vpop.f32.mrb[0].mxu0
    %v1910 = vadd.f32 0.0, %v1909
    %v1911 = vpop.f32.mrb[0].mxu0
    %v1912 = vpop.f32.mrb[0].mxu0
    %v1913 = vadd.f32 0.0, %v1912
    %v1914 = vpop.f32.mrb[0].mxu0
    %1915 = vdwg.mxu0
    %v1916 = vsel %vm43, %v1769, 0.0
    %v1917 = vsel %vm43, %v1816, 0.0
    %v1918 = vadd.f32 %v1916, %v1917
    %v1919 = vsel %vm43, %v1863, 0.0
    %v1920 = vadd.f32 %v1918, %v1919
    %v1921 = vsel %vm43, %v1910, 0.0
    %v1922 = vadd.f32 %v1920, %v1921
    %v1923 = vsel %vm43, %v1772, 0.0
    %v1924 = vsel %vm43, %v1819, 0.0
    %v1925 = vadd.f32 %v1923, %v1924
    %v1926 = vsel %vm43, %v1866, 0.0
    %v1927 = vadd.f32 %v1925, %v1926
    %v1928 = vsel %vm43, %v1913, 0.0
    %v1929 = vadd.f32 %v1927, %v1928
    %v1930 = vadd.f32 %v1083, %v1922
    %v1931 = vadd.f32 %v1084, %v1929
    %v1932 = vlaneseq
    %v1933 = vshrl.u32 %v1932, 7
    %v1934 = vsub.s32 5, %v1933
    %v1935 = vrot.slane %v1104, %v1934
    %v1936 = vadd.f32 %v1930, %v1935
    %v1937 = vadd.f32 %v1931, %v1935
    %v1938 = vsel %vm43, %v1936, 0.0
    %1939 = vadd.xlane.f32.xlu0 %v1938
    %v1940 = vpop.xlane.xlu0 %1939
    %v1941 = vsel %vm43, %v1937, 0.0
    %1942 = vadd.xlane.f32.xlu0 %v1941
    %v1943 = vpop.xlane.xlu0 %1942
    %v1944 = vmul.f32 %v1940, %v50
    %v1945 = vmul.f32 %v1943, %v50
    %v1946 = vsub.f32 %v1936, %v1944
    %v1947 = vsub.f32 %v1937, %v1945
    %v1948 = vmul.f32 %v1946, %v1946
    %v1949 = vmul.f32 %v1947, %v1947
    %v1950 = vsel %vm43, %v1948, 0.0
    %1951 = vadd.xlane.f32.xlu0 %v1950
    %v1952 = vpop.xlane.xlu0 %1951
    %v1953 = vsel %vm43, %v1949, 0.0
    %1954 = vadd.xlane.f32.xlu0 %v1953
    %v1955 = vpop.xlane.xlu0 %1954
    %v1956 = vmul.f32 %v1952, %v50
    %v1957 = vmul.f32 %v1955, %v50
    %v1958 = vadd.f32 %v1956, 1e-05
    %v1959 = vadd.f32 %v1957, 1e-05
    %v1960 = vrsqrt.pop %v1958
    %v1961 = vrsqrt.pop %v1959
    %v1962 = vmul.f32 %v1946, %v1960
    %v1963 = vmul.f32 %v1947, %v1961
    %v1964 = vlaneseq
    %v1965 = vshrl.u32 %v1964, 7
    %v1966 = vsub.s32 2, %v1965
    %v1967 = vrot.slane %v1104, %v1966
    %v1968 = vmul.f32 %v1962, %v1967
    %v1969 = vmul.f32 %v1963, %v1967
    %v1970 = vlaneseq
    %v1971 = vshrl.u32 %v1970, 7
    %v1972 = vsub.s32 3, %v1971
    %v1973 = vrot.slane %v1104, %v1972
    %v1974 = vadd.f32 %v1968, %v1973
    %v1975 = vadd.f32 %v1969, %v1973
    %v1976 = vpack.c.bf16 %v1975, %v1974
    %v1977 = vlaneseq
    %v1978 = vshrl.u32 %v1977, 7
    %v1979 = vsub.s32 6, %v1978
    %v1980 = vrot.slane %v1104, %v1979
    %v1985 = vunpack.c.l.b16 %v1090
    %v1986 = vunpack.c.h.b16 %v1090
    %v1987 = vunpack.c.l.b16 %v1091
    %v1988 = vunpack.c.h.b16 %v1091
    %v1989 = vunpack.c.l.b16 %v1092
    %v1990 = vunpack.c.h.b16 %v1092
    %v1991 = vunpack.c.l.b16 %v1093
    %v1992 = vunpack.c.h.b16 %v1093
    %v1993 = vpack.c.b16 %v1987, %v1985
    %v1994 = vpack.c.b16 %v1988, %v1986
    %v1995 = vpack.c.b16 %v1991, %v1989
    %v1996 = vpack.c.b16 %v1992, %v1990
    %1997 = vrot.lane.b32.xlu0 %v1993, 32
    %v1998 = vpop.permute.xlu0 %1997
    %1999 = vrot.lane.b32.xlu0 %v1994, 32
    %v2000 = vpop.permute.xlu0 %1999
    %2001 = vrot.lane.b32.xlu0 %v1995, 32
    %v2002 = vpop.permute.xlu0 %2001
    %2003 = vrot.lane.b32.xlu0 %v1996, 32
    %v2004 = vpop.permute.xlu0 %2003
    %v2005 = vsel %vm948, %v1998, %v2000
    %v2006 = vsel %vm948, %v2002, %v2004
    %v2010 = vsel %vm43, %v1976, 0
    %2012 = vmatprep.subr.bf16.mxu0 0
    %2013 = vmatpush1.bf16.msra.mxu0 %v2005
    %2014 = vmatprep.subr.bf16.mxu0 0
    %2015 = vmatpush1.bf16.msra.mxu0 %v2006
    %2016 = vmatprep.subr.bf16.mxu0 0
    %2017 = vmatpush1.bf16.msra.mxu0 0
    %2018 = vmatprep.subr.bf16.mxu0 0
    %2019 = vmatpush1.bf16.msra.mxu0 0
    %2020 = vmatprep.subr.bf16.mxu0 0
    %2021 = vmatpush1.bf16.msra.mxu0 0
    %2022 = vmatprep.subr.bf16.mxu0 0
    %2023 = vmatpush1.bf16.msra.mxu0 0
    %2024 = vmatprep.subr.bf16.mxu0 0
    %2025 = vmatpush1.bf16.msra.mxu0 0
    %2026 = vmatprep.subr.bf16.mxu0 0
    %2027 = vmatpush1.bf16.msra.mxu0 0
    %2028 = vmatprep.subr.bf16.mxu0 0
    %2029 = vmatpush1.bf16.msra.mxu0 0
    %2030 = vmatprep.subr.bf16.mxu0 0
    %2031 = vmatpush1.bf16.msra.mxu0 0
    %2032 = vmatprep.subr.bf16.mxu0 0
    %2033 = vmatpush1.bf16.msra.mxu0 0
    %2034 = vmatprep.subr.bf16.mxu0 0
    %2035 = vmatpush1.bf16.msra.mxu0 0
    %2036 = vmatprep.subr.bf16.mxu0 0
    %2037 = vmatpush1.bf16.msra.mxu0 0
    %2038 = vmatprep.subr.bf16.mxu0 0
    %2039 = vmatpush1.bf16.msra.mxu0 0
    %2040 = vmatprep.subr.bf16.mxu0 0
    %2041 = vmatpush1.bf16.msra.mxu0 0
    %2042 = vmatprep.subr.bf16.mxu0 0
    %2043 = vmatpush1.bf16.msra.mxu0 0
    %2044 = vmatprep.mubr.bf16.mxu0 0
    %2045 = vmatmul.mubr.bf16.gmra.mrb[0].mxu0 %v2010
    %v2046 = vpop.f32.mrb[0].mxu0
    %v2047 = vadd.f32 %v1980, %v2046
    %v2048 = vpop.f32.mrb[0].mxu0
    %v2049 = vpop.f32.mrb[0].mxu0
    %v2050 = vadd.f32 %v1980, %v2049
    %v2051 = vpop.f32.mrb[0].mxu0
    %2052 = vdwg.mxu0
    %v2053 = vmul.f32 %v2047, 1.702
    %v2054 = vmul.f32 %v2050, 1.702
    %v2055 = vxor.u32 %v2053, 2147483648
    %v2056 = vxor.u32 %v2054, 2147483648
    %v2057 = vmul.f32 %v2055, 1.442695
    %v2058 = vpow.pop %v2057
    %v2059 = vmul.f32 %v2056, 1.442695
    %v2060 = vpow.pop %v2059
    %v2061 = vadd.f32 %v2058, 1.0
    %v2062 = vadd.f32 %v2060, 1.0
    %v2063 = vrcp.pop %v2061
    %v2064 = vmul.f32 1.0, %v2063
    %v2065 = vrcp.pop %v2062
    %v2066 = vmul.f32 1.0, %v2065
    %v2067 = vmul.f32 %v2047, %v2064
    %v2068 = vmul.f32 %v2050, %v2066
    %v2069 = vpack.c.bf16 %v2068, %v2067
    %v2070 = vlaneseq
    %v2071 = vshrl.u32 %v2070, 7
    %v2072 = vsub.s32 7, %v2071
    %v2073 = vrot.slane %v1104, %v2072
    %v2078 = vunpack.c.l.b16 %v1094
    %v2079 = vunpack.c.l.b16 %v1095
    %v2080 = vunpack.c.l.b16 %v1096
    %v2081 = vunpack.c.l.b16 %v1097
    %v2082 = vpack.c.b16 %v2079, %v2078
    %v2083 = vpack.c.b16 %v2081, %v2080
    %2084 = vrot.lane.b32.xlu0 %v2082, 96
    %v2085 = vpop.permute.xlu0 %2084
    %2086 = vrot.lane.b32.xlu0 %v2083, 96
    %v2087 = vpop.permute.xlu0 %2086
    %v2089 = vsel %vm1032, %v2069, 0
    %v2092 = vsel %vm1032, %v2085, 0
    %v2095 = vsel %vm1032, %v2087, 0
    %2097 = vmatprep.subr.bf16.mxu0 0
    %2098 = vmatpush1.bf16.xpose.msra.mxu0 %v2092
    %2099 = vmatprep.subr.bf16.mxu0 0
    %2100 = vmatpush1.bf16.xpose.msra.mxu0 %v2095
    %2101 = vmatprep.subr.bf16.mxu0 0
    %2102 = vmatpush1.bf16.xpose.msra.mxu0 0
    %2103 = vmatprep.subr.bf16.mxu0 0
    %2104 = vmatpush1.bf16.xpose.msra.mxu0 0
    %2105 = vmatprep.subr.bf16.mxu0 0
    %2106 = vmatpush1.bf16.xpose.msra.mxu0 0
    %2107 = vmatprep.subr.bf16.mxu0 0
    %2108 = vmatpush1.bf16.xpose.msra.mxu0 0
    %2109 = vmatprep.subr.bf16.mxu0 0
    %2110 = vmatpush1.bf16.xpose.msra.mxu0 0
    %2111 = vmatprep.subr.bf16.mxu0 0
    %2112 = vmatpush1.bf16.xpose.msra.mxu0 0
    %2113 = vmatprep.subr.bf16.mxu0 0
    %2114 = vmatpush1.bf16.xpose.msra.mxu0 0
    %2115 = vmatprep.subr.bf16.mxu0 0
    %2116 = vmatpush1.bf16.xpose.msra.mxu0 0
    %2117 = vmatprep.subr.bf16.mxu0 0
    %2118 = vmatpush1.bf16.xpose.msra.mxu0 0
    %2119 = vmatprep.subr.bf16.mxu0 0
    %2120 = vmatpush1.bf16.xpose.msra.mxu0 0
    %2121 = vmatprep.subr.bf16.mxu0 0
    %2122 = vmatpush1.bf16.xpose.msra.mxu0 0
    %2123 = vmatprep.subr.bf16.mxu0 0
    %2124 = vmatpush1.bf16.xpose.msra.mxu0 0
    %2125 = vmatprep.subr.bf16.mxu0 0
    %2126 = vmatpush1.bf16.xpose.msra.mxu0 0
    %2127 = vmatprep.subr.bf16.mxu0 0
    %2128 = vmatpush1.bf16.xpose.msra.mxu0 0
    %2129 = vmatprep.mubr.bf16.mxu0 0
    %2130 = vmatmul.mubr.bf16.gmra.mrb[0].mxu0 %v2089
    %v2131 = vpop.f32.mrb[0].mxu0
    %v2132 = vadd.f32 %v2073, %v2131
    %v2133 = vpop.f32.mrb[0].mxu0
    %v2134 = vpop.f32.mrb[0].mxu0
    %v2135 = vadd.f32 %v2073, %v2134
    %v2136 = vpop.f32.mrb[0].mxu0
    %2137 = vdwg.mxu0
    %v2138 = vadd.f32 %v1936, %v2132
    %v2139 = vadd.f32 %v1937, %v2135
    %s2140 = scalar_lea.vmem %s4, 16
    %v2141 = vld [vmem:[%s2140] sm:$0xff]
    %v2142 = vsel %vm43, %v2138, 0.0
    %2143 = vadd.xlane.f32.xlu0 %v2142
    %v2144 = vpop.xlane.xlu0 %2143
    %v2145 = vsel %vm43, %v2139, 0.0
    %2146 = vadd.xlane.f32.xlu0 %v2145
    %v2147 = vpop.xlane.xlu0 %2146
    %v2148 = vmul.f32 %v2144, %v50
    %v2149 = vmul.f32 %v2147, %v50
    %v2150 = vsub.f32 %v2138, %v2148
    %v2151 = vsub.f32 %v2139, %v2149
    %v2152 = vmul.f32 %v2150, %v2150
    %v2153 = vmul.f32 %v2151, %v2151
    %v2154 = vsel %vm43, %v2152, 0.0
    %2155 = vadd.xlane.f32.xlu0 %v2154
    %v2156 = vpop.xlane.xlu0 %2155
    %v2157 = vsel %vm43, %v2153, 0.0
    %2158 = vadd.xlane.f32.xlu0 %v2157
    %v2159 = vpop.xlane.xlu0 %2158
    %v2160 = vmul.f32 %v2156, %v50
    %v2161 = vmul.f32 %v2159, %v50
    %v2162 = vadd.f32 %v2160, 1e-05
    %v2163 = vadd.f32 %v2161, 1e-05
    %v2164 = vrsqrt.pop %v2162
    %v2165 = vrsqrt.pop %v2163
    %v2166 = vmul.f32 %v2150, %v2164
    %v2167 = vmul.f32 %v2151, %v2165
    %v2168 = vlaneseq
    %v2169 = vshrl.u32 %v2168, 7
    %v2170 = vsub.s32 0, %v2169
    %v2171 = vrot.slane %v2141, %v2170
    %v2172 = vmul.f32 %v2166, %v2171
    %v2173 = vmul.f32 %v2167, %v2171
    %v2174 = vlaneseq
    %v2175 = vshrl.u32 %v2174, 7
    %v2176 = vsub.s32 1, %v2175
    %v2177 = vrot.slane %v2141, %v2176
    %v2178 = vadd.f32 %v2172, %v2177
    %v2179 = vadd.f32 %v2173, %v2177
    %2180 = vst.msk [vmem:[#allocation2] sm:$0xff] %vm43, %v2178
    %2181 = vst.msk [vmem:[#allocation2 + $0x8] sm:$0xff] %vm43, %v2179
    // Predicated region
    $region22: #{neuron_text_encoder_forward.1} parent=1 // pred_check
      _
    $region23: #{neuron_text_encoder_forward.1} parent=1 // pred_check_branch
      %2183 = sbr.rel (0) target = $region25
    $region24: #{neuron_text_encoder_forward.1} parent=1 // pred_region
      %s2185 = ssub.s32 256, 256
      %2186 = vsyncadd [#allocation3], %s2185
      %s2187 = sshll.u32 [#allocation2], 4
      %s2188 = int_to_ptr.vmem [resolvable:$true] %s2187
      %2193 = dma.vmem_to_hbm [thread:$0]  %s2188, 256, %s5, [#allocation3], 128, 128, 8
    $region25: #{neuron_text_encoder_forward.1} parent=1 // pred_fallthru
      _
    // Predicated region
    $region26: #{neuron_text_encoder_forward.1} parent=1 // pred_check
      _
    $region27: #{neuron_text_encoder_forward.1} parent=1 // pred_check_branch
      %2195 = sbr.rel (0) target = $region29
    $region28: #{neuron_text_encoder_forward.1} parent=1 // pred_region
      %2196 = dma.done [#allocation3], 256
    $region29: #{neuron_text_encoder_forward.1} parent=1 // pred_fallthru
      _
    %2197 = vsyncpa [#allocation3], 1

</llo_original>
